<compile_context>
chip_gen: v7x
topology: tpu7x:2x2x1
jax: 0.10.0
libtpu: 0.0.40
codegen_flags: <defaults>
</compile_context>

<pallas_src>
import jax
import jax.numpy as jnp
from jax import lax
from jax.experimental import pallas as pl
from jax.experimental.pallas import tpu as pltpu

_BN_EPS = 1e-5


def _silu(v):
    # sigmoid = 1 / (1 + exp(-v)); exp + reciprocal go to the EUP slot.
    return v * pl.reciprocal(1.0 + jnp.exp(-v), approx=False)


# ---------------------------------------------------------------------------
# Kernel A: 1x1 conv (+ folded BN) + SiLU as a row-tiled streaming matmul.
# ---------------------------------------------------------------------------
def _pointwise_bn_silu_kernel(x_ref, w_ref, b_ref, o_ref):
    y = jnp.dot(x_ref[...], w_ref[...], preferred_element_type=jnp.float32)
    y = y + b_ref[...]
    o_ref[...] = _silu(y).astype(o_ref.dtype)


def pointwise_bn_silu(x2d, w, b):
    """x2d: (M, Cin); w: (Cin, Cout) with BN scale folded; b: (Cout,) fused bias."""
    M, Cin = x2d.shape
    Cout = w.shape[1]
    # Largest row tile (multiple of 8) dividing M, capped so the grid has several
    # steps and the auto-pipeline can overlap the HBM streaming with compute.
    tm = M
    for cand in (256, 128, 64, 32, 16, 8):
        if M % cand == 0:
            tm = cand
            break
    grid = (M // tm,)
    return pl.pallas_call(
        _pointwise_bn_silu_kernel,
        out_shape=jax.ShapeDtypeStruct((M, Cout), x2d.dtype),
        grid_spec=pltpu.PrefetchScalarGridSpec(
            num_scalar_prefetch=0,
            grid=grid,
            in_specs=[
                pl.BlockSpec((tm, Cin), lambda i: (i, 0)),
                pl.BlockSpec((Cin, Cout), lambda i: (0, 0)),
                pl.BlockSpec((1, Cout), lambda i: (0, 0)),
            ],
            out_specs=pl.BlockSpec((tm, Cout), lambda i: (i, 0)),
        ),
        compiler_params=pltpu.CompilerParams(dimension_semantics=("parallel",)),
    )(x2d, w, b.reshape(1, Cout))


# ---------------------------------------------------------------------------
# Kernel B: fused [dw3x3 s2 + BN] -> [1x1 conv + BN + SiLU] for both branches.
# Inputs are parity-decomposed padded NHWC tensors (4 planes stacked along rows),
# so each of the 9 depthwise taps is a contiguous (Ho, Wo, C) window.
# ---------------------------------------------------------------------------
def _make_tail_kernel(Ho, Wo):
    Hq = Ho + 1  # rows per parity plane

    def _dwconv(planes_ref, k_ref, c):
        acc = jnp.zeros((Ho, Wo, c), jnp.float32)
        for dy in range(3):
            for dx in range(3):
                p = (dy % 2) * 2 + (dx % 2)   # which parity plane
                oy, ox = dy // 2, dx // 2     # offset inside that plane
                tap = planes_ref[pl.ds(p * Hq + oy, Ho), pl.ds(ox, Wo), :]
                acc = acc + tap * k_ref[3 * dy + dx]   # k tap (1, C) broadcasts
        return acc.reshape(Ho * Wo, c)

    def kernel(xp_ref, tp_ref, k1_ref, w1_ref, b1_ref, k2_ref, w2_ref, b2_ref,
               o1_ref, o2_ref):
        cin = xp_ref.shape[-1]
        cmid = tp_ref.shape[-1]
        # branch1: dw(x) (BN folded into k1/b1) -> 1x1 -> SiLU
        d1 = _dwconv(xp_ref, k1_ref, cin)
        y1 = jnp.dot(d1, w1_ref[...], preferred_element_type=jnp.float32) + b1_ref[...]
        o1_ref[...] = _silu(y1).astype(o1_ref.dtype)
        # branch2 tail: dw(t2) (BN folded into k2/b2) -> 1x1 -> SiLU
        d2 = _dwconv(tp_ref, k2_ref, cmid)
        y2 = jnp.dot(d2, w2_ref[...], preferred_element_type=jnp.float32) + b2_ref[...]
        o2_ref[...] = _silu(y2).astype(o2_ref.dtype)

    return kernel


# ---------------------------------------------------------------------------
# Wrapper: BN folding + layout plumbing + the two pallas_calls.
# ---------------------------------------------------------------------------
def _fold_bn(bn, eps=_BN_EPS):
    s = bn["gamma"] / jnp.sqrt(bn["var"] + eps)
    return s, bn["beta"] - s * bn["mean"]


def _parity_planes(a):
    """a: padded NHWC (N, H+2, W+2, C) with even H, W.
    Returns (N, 4*(H/2+1), W/2+1, C): the 4 (row,col)-parity sub-grids stacked
    along the row axis (space-to-depth for the stride-2 depthwise conv)."""
    n, hp, wp, c = a.shape
    planes = jnp.stack(
        [a[:, 0::2, 0::2, :], a[:, 0::2, 1::2, :],
         a[:, 1::2, 0::2, :], a[:, 1::2, 1::2, :]], axis=1)
    return planes.reshape(n, 4 * (hp // 2), wp // 2, c)


def residual_downsample(x, p):
    """x: (N, Cin, H, W) float32 -> (N, Cout, H/2, W/2)."""
    N, Cin, H, W = x.shape
    Cmid = p["pw1_w"].shape[1]
    Cout = 2 * Cmid
    Ho, Wo = H // 2, W // 2
    Hq, Wq = Ho + 1, Wo + 1
    assert H % 2 == 0 and W % 2 == 0 and Wo % 8 == 0, (
        "kernel assumes even H/W with (W//2) % 8 == 0")
    # TODO(synk): odd spatial sizes / Wo not a multiple of 8 need a padded re-tiling
    # of the parity planes.
    # TODO(synk): training-mode BatchNorm (batch statistics) is not implemented;
    # eval-mode running stats are folded into the conv weights.

    # ---- fold all BatchNorms + conv biases into weights / single biases ----
    s2a, t2a = _fold_bn(p["bn_pw2a"])
    wa = p["pw2a_w"] * s2a[None, :]
    ba = p["pw2a_b"] * s2a + t2a

    s1, t1 = _fold_bn(p["bn_dw1"])
    k1 = (p["dw1_w"] * s1[None, None, :]).reshape(9, 1, Cin)
    c1 = p["dw1_b"] * s1 + t1
    s1b, t1b = _fold_bn(p["bn_pw1"])
    w1 = p["pw1_w"] * s1b[None, :]
    b1 = (p["pw1_b"] * s1b + t1b) + jnp.dot(c1, w1, precision=lax.Precision.HIGHEST)

    s2, t2 = _fold_bn(p["bn_dw2"])
    k2 = (p["dw2_w"] * s2[None, None, :]).reshape(9, 1, Cmid)
    c2 = p["dw2_b"] * s2 + t2
    s2b, t2b = _fold_bn(p["bn_pw2b"])
    w2 = p["pw2b_w"] * s2b[None, :]
    b2 = (p["pw2b_b"] * s2b + t2b) + jnp.dot(c2, w2, precision=lax.Precision.HIGHEST)

    # ---- layout plumbing: NCHW -> NHWC (channels lane-dense) ----
    x_nhwc = jnp.transpose(x, (0, 2, 3, 1))

    # Kernel A: branch2 head 1x1 conv + BN + SiLU over all N*H*W pixels.
    t2_2d = pointwise_bn_silu(x_nhwc.reshape(N * H * W, Cin), wa, ba)
    t2_nhwc = t2_2d.reshape(N, H, W, Cmid)

    # Pad + parity-decompose both depthwise-conv inputs (wrapper-side layout work).
    pad = ((0, 0), (1, 1), (1, 1), (0, 0))
    xp = _parity_planes(jnp.pad(x_nhwc, pad))
    tp = _parity_planes(jnp.pad(t2_nhwc, pad))

    # Kernel B: fused downsample tails of both branches, one grid step per image.
    b1_flat, b2_flat = pl.pallas_call(
        _make_tail_kernel(Ho, Wo),
        out_shape=(
            jax.ShapeDtypeStruct((N, Ho * Wo, Cmid), x.dtype),
            jax.ShapeDtypeStruct((N, Ho * Wo, Cmid), x.dtype),
        ),
        grid_spec=pltpu.PrefetchScalarGridSpec(
            num_scalar_prefetch=0,
            grid=(N,),
            in_specs=[
                pl.BlockSpec((None, 4 * Hq, Wq, Cin), lambda n: (n, 0, 0, 0)),
                pl.BlockSpec((None, 4 * Hq, Wq, Cmid), lambda n: (n, 0, 0, 0)),
                pl.BlockSpec((9, 1, Cin), lambda n: (0, 0, 0)),
                pl.BlockSpec((Cin, Cmid), lambda n: (0, 0)),
                pl.BlockSpec((1, Cmid), lambda n: (0, 0)),
                pl.BlockSpec((9, 1, Cmid), lambda n: (0, 0, 0)),
                pl.BlockSpec((Cmid, Cmid), lambda n: (0, 0)),
                pl.BlockSpec((1, Cmid), lambda n: (0, 0)),
            ],
            out_specs=(
                pl.BlockSpec((None, Ho * Wo, Cmid), lambda n: (n, 0, 0)),
                pl.BlockSpec((None, Ho * Wo, Cmid), lambda n: (n, 0, 0)),
            ),
        ),
        compiler_params=pltpu.CompilerParams(dimension_semantics=("parallel",)),
    )(xp, tp, k1, w1, b1.reshape(1, Cmid), k2, w2, b2.reshape(1, Cmid))

    # concat + ChannelShuffle(groups=2) == interleave the branch channel blocks,
    # then NHWC -> NCHW.  Pure wrapper-side layout plumbing.
    y = jnp.stack([b1_flat, b2_flat], axis=-1).reshape(N, Ho, Wo, Cout)
    return jnp.transpose(y, (0, 3, 1, 2))


# ---------------------------------------------------------------------------
# Pure-JAX reference mirroring the PyTorch module (unfused convs + BN + SiLU).
# ---------------------------------------------------------------------------
def _silu_ref(v):
    return v * jax.nn.sigmoid(v)


def _bn_ref(x, bn, eps=_BN_EPS):
    sh = (1, -1, 1, 1)
    return ((x - bn["mean"].reshape(sh)) / jnp.sqrt(bn["var"].reshape(sh) + eps)
            * bn["gamma"].reshape(sh) + bn["beta"].reshape(sh))


def _dwconv_s2_ref(x, w_hwc, b):
    c = x.shape[1]
    w = jnp.transpose(w_hwc, (2, 0, 1))[:, None, :, :]      # (C, 1, 3, 3) OIHW
    y = lax.conv_general_dilated(
        x, w, window_strides=(2, 2), padding=((1, 1), (1, 1)),
        dimension_numbers=("NCHW", "OIHW", "NCHW"), feature_group_count=c,
        precision=lax.Precision.HIGHEST)
    return y + b.reshape(1, -1, 1, 1)


def _pwconv_ref(x, w_io, b):
    w = jnp.transpose(w_io, (1, 0))[:, :, None, None]        # (Cout, Cin, 1, 1)
    y = lax.conv_general_dilated(
        x, w, window_strides=(1, 1), padding=((0, 0), (0, 0)),
        dimension_numbers=("NCHW", "OIHW", "NCHW"),
        precision=lax.Precision.HIGHEST)
    return y + b.reshape(1, -1, 1, 1)


def reference(x, p):
    r1 = _bn_ref(_dwconv_s2_ref(x, p["dw1_w"], p["dw1_b"]), p["bn_dw1"])
    r1 = _silu_ref(_bn_ref(_pwconv_ref(r1, p["pw1_w"], p["pw1_b"]), p["bn_pw1"]))

    r2 = _silu_ref(_bn_ref(_pwconv_ref(x, p["pw2a_w"], p["pw2a_b"]), p["bn_pw2a"]))
    r2 = _bn_ref(_dwconv_s2_ref(r2, p["dw2_w"], p["dw2_b"]), p["bn_dw2"])
    r2 = _silu_ref(_bn_ref(_pwconv_ref(r2, p["pw2b_w"], p["pw2b_b"]), p["bn_pw2b"]))

    y = jnp.concatenate([r1, r2], axis=1)
    n, c, h, w = y.shape
    # ChannelShuffle(groups=2), exactly as the PyTorch module
    y = y.reshape(n, 2, c // 2, h, w).transpose(0, 2, 1, 3, 4).reshape(n, c, h, w)
    return y


# ---------------------------------------------------------------------------
# Deterministic synthetic parameters (PyTorch-style: conv weight+bias, BN stats).
# ---------------------------------------------------------------------------
def make_params(key, cin, cout):
    cmid = cout // 2
    ks = iter(jax.random.split(key, 32))

    def nrm(shape, scale=0.3):
        return scale * jax.random.normal(next(ks), shape, dtype=jnp.float32)

    def bn(c):
        return dict(
            gamma=1.0 + 0.1 * jax.random.normal(next(ks), (c,), dtype=jnp.float32),
            beta=nrm((c,), 0.1),
            mean=nrm((c,), 0.2),
            var=jax.random.uniform(next(ks), (c,), jnp.float32, 0.5, 1.5),
        )

    return dict(
        # branch1: dw3x3 s2 (groups=cin) -> BN -> [1x1 -> BN -> SiLU]
        dw1_w=nrm((3, 3, cin)), dw1_b=nrm((cin,), 0.1), bn_dw1=bn(cin),
        pw1_w=nrm((cin, cmid)), pw1_b=nrm((cmid,), 0.1), bn_pw1=bn(cmid),
        # branch2: [1x1 -> BN -> SiLU] -> dw3x3 s2 -> BN -> [1x1 -> BN -> SiLU]
        pw2a_w=nrm((cin, cmid)), pw2a_b=nrm((cmid,), 0.1), bn_pw2a=bn(cmid),
        dw2_w=nrm((3, 3, cmid)), dw2_b=nrm((cmid,), 0.1), bn_dw2=bn(cmid),
        pw2b_w=nrm((cmid, cmid)), pw2b_b=nrm((cmid,), 0.1), bn_pw2b=bn(cmid),
    )


if __name__ == "__main__":
    N, CIN, H, W = 2, 4, 16, 16
    COUT = 8  # out_channels; each branch produces COUT // 2 channels

    key = jax.random.PRNGKey(0)
    kx, kp = jax.random.split(key)
    x = jax.random.normal(kx, (N, CIN, H, W), dtype=jnp.float32)
    params = make_params(kp, CIN, COUT)

    out = jax.jit(residual_downsample)(x, params)
    out = jax.block_until_ready(out)

    ref = reference(x, params)
    assert out.shape == (N, COUT, H // 2, W // 2), out.shape
    max_diff = float(jnp.max(jnp.abs(out - ref)))
    assert jnp.allclose(out, ref, atol=1e-4, rtol=1e-4), (
        f"mismatch vs reference: max abs diff = {max_diff}")

    print("KERNEL_OK")
</pallas_src>

<mosaic_0001>
module attributes {stable_mosaic.version = 11 : i64} {
  func.func @_pointwise_bn_silu_kernel(%arg0: i32, %arg1: memref<256x4xf32, #tpu.memory_space<vmem>>, %arg2: memref<4x4xf32, #tpu.memory_space<vmem>>, %arg3: memref<1x4xf32, #tpu.memory_space<vmem>>, %arg4: memref<256x4xf32, #tpu.memory_space<vmem>>) attributes {dimension_semantics = [#tpu.dimension_semantics<parallel>], iteration_bounds = array<i64: 2>, scalar_prefetch = 0 : i64, scratch_operands = 0 : i64, tpu.core_type = #tpu.core_type<tc>, window_params = [{transform_indices = @transform_0, window_bounds = array<i64: 256, 4>}, {pipeline_mode = #tpu.pipeline_mode<synchronous>, transform_indices = @transform_1, window_bounds = array<i64: 4, 4>}, {pipeline_mode = #tpu.pipeline_mode<synchronous>, transform_indices = @transform_2, window_bounds = array<i64: 1, 4>}, {transform_indices = @transform_3, window_bounds = array<i64: 256, 4>}]} {
    %c0 = arith.constant 0 : index
    %c0_0 = arith.constant 0 : index
    %0 = vector.load %arg1[%c0, %c0_0] : memref<256x4xf32, #tpu.memory_space<vmem>>, vector<256x4xf32>
    %c0_1 = arith.constant 0 : index
    %c0_2 = arith.constant 0 : index
    %1 = vector.load %arg2[%c0_1, %c0_2] : memref<4x4xf32, #tpu.memory_space<vmem>>, vector<4x4xf32>
    %cst = arith.constant dense<0.000000e+00> : vector<256x4xf32>
    %2 = tpu.matmul %0, %1, %cst {dimension_numbers = #tpu.dot_dimension_numbers<[1], [0], [0], [1], [0, 0, 1, 1], [], []>} : vector<256x4xf32>, vector<4x4xf32>, vector<256x4xf32> -> vector<256x4xf32>
    %c0_3 = arith.constant 0 : index
    %c0_4 = arith.constant 0 : index
    %3 = vector.load %arg3[%c0_3, %c0_4] : memref<1x4xf32, #tpu.memory_space<vmem>>, vector<1x4xf32>
    %4 = vector.broadcast %3 : vector<1x4xf32> to vector<256x4xf32>
    %5 = arith.addf %2, %4 : vector<256x4xf32>
    %cst_5 = arith.constant 0.000000e+00 : f32
    %6 = vector.broadcast %cst_5 : f32 to vector<256x4xf32>
    %7 = arith.subf %6, %5 : vector<256x4xf32>
    %8 = math.exp %7 : vector<256x4xf32>
    %cst_6 = arith.constant 1.000000e+00 : f32
    %9 = vector.broadcast %cst_6 : f32 to vector<256x4xf32>
    %10 = arith.addf %9, %8 : vector<256x4xf32>
    %11 = tpu.reciprocal %10 : vector<256x4xf32> -> vector<256x4xf32>
    %12 = arith.mulf %5, %11 : vector<256x4xf32>
    %c0_7 = arith.constant 0 : index
    %c0_8 = arith.constant 0 : index
    %13 = vector.load %arg4[%c0_7, %c0_8] : memref<256x4xf32, #tpu.memory_space<vmem>>, vector<256x4xf32>
    tpu.vector_store %arg4[%c0_7, %c0_8], %12 {strides = array<i32>} : memref<256x4xf32, #tpu.memory_space<vmem>>, vector<256x4xf32>,
    return
  }
  func.func @transform_0(%arg0: i32) -> (i32, i32) {
    %c0_i32 = arith.constant 0 : i32
    %c0_i32_0 = arith.constant 0 : i32
    return %arg0, %c0_i32 : i32, i32
  }
  func.func @transform_1(%arg0: i32) -> (i32, i32) {
    %c0_i32 = arith.constant 0 : i32
    %c0_i32_0 = arith.constant 0 : i32
    %c0_i32_1 = arith.constant 0 : i32
    return %c0_i32, %c0_i32_0 : i32, i32
  }
  func.func @transform_2(%arg0: i32) -> (i32, i32) {
    %c0_i32 = arith.constant 0 : i32
    %c0_i32_0 = arith.constant 0 : i32
    %c0_i32_1 = arith.constant 0 : i32
    return %c0_i32, %c0_i32_0 : i32, i32
  }
  func.func @transform_3(%arg0: i32) -> (i32, i32) {
    %c0_i32 = arith.constant 0 : i32
    %c0_i32_0 = arith.constant 0 : i32
    return %arg0, %c0_i32 : i32, i32
  }
}

module attributes {stable_mosaic.version = 11 : i64} {
  func.func @kernel(%arg0: i32, %arg1: memref<1x36x9x4xf32, #tpu.memory_space<vmem>>, %arg2: memref<1x36x9x4xf32, #tpu.memory_space<vmem>>, %arg3: memref<9x1x4xf32, #tpu.memory_space<vmem>>, %arg4: memref<4x4xf32, #tpu.memory_space<vmem>>, %arg5: memref<1x4xf32, #tpu.memory_space<vmem>>, %arg6: memref<9x1x4xf32, #tpu.memory_space<vmem>>, %arg7: memref<4x4xf32, #tpu.memory_space<vmem>>, %arg8: memref<1x4xf32, #tpu.memory_space<vmem>>, %arg9: memref<1x64x4xf32, #tpu.memory_space<vmem>>, %arg10: memref<1x64x4xf32, #tpu.memory_space<vmem>>) attributes {dimension_semantics = [#tpu.dimension_semantics<parallel>], iteration_bounds = array<i64: 2>, scalar_prefetch = 0 : i64, scratch_operands = 0 : i64, tpu.core_type = #tpu.core_type<tc>, window_params = [{transform_indices = @transform_0, window_bounds = array<i64: 1, 36, 9, 4>}, {transform_indices = @transform_1, window_bounds = array<i64: 1, 36, 9, 4>}, {pipeline_mode = #tpu.pipeline_mode<synchronous>, transform_indices = @transform_2, window_bounds = array<i64: 9, 1, 4>}, {pipeline_mode = #tpu.pipeline_mode<synchronous>, transform_indices = @transform_3, window_bounds = array<i64: 4, 4>}, {pipeline_mode = #tpu.pipeline_mode<synchronous>, transform_indices = @transform_4, window_bounds = array<i64: 1, 4>}, {pipeline_mode = #tpu.pipeline_mode<synchronous>, transform_indices = @transform_5, window_bounds = array<i64: 9, 1, 4>}, {pipeline_mode = #tpu.pipeline_mode<synchronous>, transform_indices = @transform_6, window_bounds = array<i64: 4, 4>}, {pipeline_mode = #tpu.pipeline_mode<synchronous>, transform_indices = @transform_7, window_bounds = array<i64: 1, 4>}, {transform_indices = @transform_8, window_bounds = array<i64: 1, 64, 4>}, {transform_indices = @transform_9, window_bounds = array<i64: 1, 64, 4>}]} {
    %cst = arith.constant 0.000000e+00 : f32
    %0 = vector.broadcast %cst : f32 to vector<8x8x4xf32>
    %c0 = arith.constant 0 : index
    %c0_0 = arith.constant 0 : index
    %c0_1 = arith.constant 0 : index
    %c0_2 = arith.constant 0 : index
    %1 = vector.load %arg1[%c0, %c0_0, %c0_1, %c0_2] : memref<1x36x9x4xf32, #tpu.memory_space<vmem>>, vector<1x8x8x4xf32>
    %2 = vector.shape_cast %1 : vector<1x8x8x4xf32> to vector<8x8x4xf32>
    %c0_3 = arith.constant 0 : index
    %c0_4 = arith.constant 0 : index
    %c0_5 = arith.constant 0 : index
    %3 = vector.load %arg3[%c0_3, %c0_4, %c0_5] : memref<9x1x4xf32, #tpu.memory_space<vmem>>, vector<1x1x4xf32>
    %4 = vector.shape_cast %3 : vector<1x1x4xf32> to vector<1x4xf32>
    %5 = vector.shape_cast %4 : vector<1x4xf32> to vector<1x1x4xf32>
    %6 = vector.broadcast %5 : vector<1x1x4xf32> to vector<8x8x4xf32>
    %7 = arith.mulf %2, %6 : vector<8x8x4xf32>
    %8 = arith.addf %0, %7 : vector<8x8x4xf32>
    %c0_6 = arith.constant 0 : index
    %c9 = arith.constant 9 : index
    %c0_7 = arith.constant 0 : index
    %c0_8 = arith.constant 0 : index
    %9 = vector.load %arg1[%c0_6, %c9, %c0_7, %c0_8] : memref<1x36x9x4xf32, #tpu.memory_space<vmem>>, vector<1x8x8x4xf32>
    %10 = vector.shape_cast %9 : vector<1x8x8x4xf32> to vector<8x8x4xf32>
    %c1 = arith.constant 1 : index
    %c0_9 = arith.constant 0 : index
    %c0_10 = arith.constant 0 : index
    %11 = vector.load %arg3[%c1, %c0_9, %c0_10] : memref<9x1x4xf32, #tpu.memory_space<vmem>>, vector<1x1x4xf32>
    %12 = vector.shape_cast %11 : vector<1x1x4xf32> to vector<1x4xf32>
    %13 = vector.shape_cast %12 : vector<1x4xf32> to vector<1x1x4xf32>
    %14 = vector.broadcast %13 : vector<1x1x4xf32> to vector<8x8x4xf32>
    %15 = arith.mulf %10, %14 : vector<8x8x4xf32>
    %16 = arith.addf %8, %15 : vector<8x8x4xf32>
    %c0_11 = arith.constant 0 : index
    %c0_12 = arith.constant 0 : index
    %c1_13 = arith.constant 1 : index
    %c0_14 = arith.constant 0 : index
    %17 = vector.load %arg1[%c0_11, %c0_12, %c1_13, %c0_14] : memref<1x36x9x4xf32, #tpu.memory_space<vmem>>, vector<1x8x8x4xf32>
    %18 = vector.shape_cast %17 : vector<1x8x8x4xf32> to vector<8x8x4xf32>
    %c2 = arith.constant 2 : index
    %c0_15 = arith.constant 0 : index
    %c0_16 = arith.constant 0 : index
    %19 = vector.load %arg3[%c2, %c0_15, %c0_16] : memref<9x1x4xf32, #tpu.memory_space<vmem>>, vector<1x1x4xf32>
    %20 = vector.shape_cast %19 : vector<1x1x4xf32> to vector<1x4xf32>
    %21 = vector.shape_cast %20 : vector<1x4xf32> to vector<1x1x4xf32>
    %22 = vector.broadcast %21 : vector<1x1x4xf32> to vector<8x8x4xf32>
    %23 = arith.mulf %18, %22 : vector<8x8x4xf32>
    %24 = arith.addf %16, %23 : vector<8x8x4xf32>
    %c0_17 = arith.constant 0 : index
    %c18 = arith.constant 18 : index
    %c0_18 = arith.constant 0 : index
    %c0_19 = arith.constant 0 : index
    %25 = vector.load %arg1[%c0_17, %c18, %c0_18, %c0_19] : memref<1x36x9x4xf32, #tpu.memory_space<vmem>>, vector<1x8x8x4xf32>
    %26 = vector.shape_cast %25 : vector<1x8x8x4xf32> to vector<8x8x4xf32>
    %c3 = arith.constant 3 : index
    %c0_20 = arith.constant 0 : index
    %c0_21 = arith.constant 0 : index
    %27 = vector.load %arg3[%c3, %c0_20, %c0_21] : memref<9x1x4xf32, #tpu.memory_space<vmem>>, vector<1x1x4xf32>
    %28 = vector.shape_cast %27 : vector<1x1x4xf32> to vector<1x4xf32>
    %29 = vector.shape_cast %28 : vector<1x4xf32> to vector<1x1x4xf32>
    %30 = vector.broadcast %29 : vector<1x1x4xf32> to vector<8x8x4xf32>
    %31 = arith.mulf %26, %30 : vector<8x8x4xf32>
    %32 = arith.addf %24, %31 : vector<8x8x4xf32>
    %c0_22 = arith.constant 0 : index
    %c27 = arith.constant 27 : index
    %c0_23 = arith.constant 0 : index
    %c0_24 = arith.constant 0 : index
    %33 = vector.load %arg1[%c0_22, %c27, %c0_23, %c0_24] : memref<1x36x9x4xf32, #tpu.memory_space<vmem>>, vector<1x8x8x4xf32>
    %34 = vector.shape_cast %33 : vector<1x8x8x4xf32> to vector<8x8x4xf32>
    %c4 = arith.constant 4 : index
    %c0_25 = arith.constant 0 : index
    %c0_26 = arith.constant 0 : index
    %35 = vector.load %arg3[%c4, %c0_25, %c0_26] : memref<9x1x4xf32, #tpu.memory_space<vmem>>, vector<1x1x4xf32>
    %36 = vector.shape_cast %35 : vector<1x1x4xf32> to vector<1x4xf32>
    %37 = vector.shape_cast %36 : vector<1x4xf32> to vector<1x1x4xf32>
    %38 = vector.broadcast %37 : vector<1x1x4xf32> to vector<8x8x4xf32>
    %39 = arith.mulf %34, %38 : vector<8x8x4xf32>
    %40 = arith.addf %32, %39 : vector<8x8x4xf32>
    %c0_27 = arith.constant 0 : index
    %c18_28 = arith.constant 18 : index
    %c1_29 = arith.constant 1 : index
    %c0_30 = arith.constant 0 : index
    %41 = vector.load %arg1[%c0_27, %c18_28, %c1_29, %c0_30] : memref<1x36x9x4xf32, #tpu.memory_space<vmem>>, vector<1x8x8x4xf32>
    %42 = vector.shape_cast %41 : vector<1x8x8x4xf32> to vector<8x8x4xf32>
    %c5 = arith.constant 5 : index
    %c0_31 = arith.constant 0 : index
    %c0_32 = arith.constant 0 : index
    %43 = vector.load %arg3[%c5, %c0_31, %c0_32] : memref<9x1x4xf32, #tpu.memory_space<vmem>>, vector<1x1x4xf32>
    %44 = vector.shape_cast %43 : vector<1x1x4xf32> to vector<1x4xf32>
    %45 = vector.shape_cast %44 : vector<1x4xf32> to vector<1x1x4xf32>
    %46 = vector.broadcast %45 : vector<1x1x4xf32> to vector<8x8x4xf32>
    %47 = arith.mulf %42, %46 : vector<8x8x4xf32>
    %48 = arith.addf %40, %47 : vector<8x8x4xf32>
    %c0_33 = arith.constant 0 : index
    %c1_34 = arith.constant 1 : index
    %c0_35 = arith.constant 0 : index
    %c0_36 = arith.constant 0 : index
    %49 = vector.load %arg1[%c0_33, %c1_34, %c0_35, %c0_36] : memref<1x36x9x4xf32, #tpu.memory_space<vmem>>, vector<1x8x8x4xf32>
    %50 = vector.shape_cast %49 : vector<1x8x8x4xf32> to vector<8x8x4xf32>
    %c6 = arith.constant 6 : index
    %c0_37 = arith.constant 0 : index
    %c0_38 = arith.constant 0 : index
    %51 = vector.load %arg3[%c6, %c0_37, %c0_38] : memref<9x1x4xf32, #tpu.memory_space<vmem>>, vector<1x1x4xf32>
    %52 = vector.shape_cast %51 : vector<1x1x4xf32> to vector<1x4xf32>
    %53 = vector.shape_cast %52 : vector<1x4xf32> to vector<1x1x4xf32>
    %54 = vector.broadcast %53 : vector<1x1x4xf32> to vector<8x8x4xf32>
    %55 = arith.mulf %50, %54 : vector<8x8x4xf32>
    %56 = arith.addf %48, %55 : vector<8x8x4xf32>
    %c0_39 = arith.constant 0 : index
    %c10 = arith.constant 10 : index
    %c0_40 = arith.constant 0 : index
    %c0_41 = arith.constant 0 : index
    %57 = vector.load %arg1[%c0_39, %c10, %c0_40, %c0_41] : memref<1x36x9x4xf32, #tpu.memory_space<vmem>>, vector<1x8x8x4xf32>
    %58 = vector.shape_cast %57 : vector<1x8x8x4xf32> to vector<8x8x4xf32>
    %c7 = arith.constant 7 : index
    %c0_42 = arith.constant 0 : index
    %c0_43 = arith.constant 0 : index
    %59 = vector.load %arg3[%c7, %c0_42, %c0_43] : memref<9x1x4xf32, #tpu.memory_space<vmem>>, vector<1x1x4xf32>
    %60 = vector.shape_cast %59 : vector<1x1x4xf32> to vector<1x4xf32>
    %61 = vector.shape_cast %60 : vector<1x4xf32> to vector<1x1x4xf32>
    %62 = vector.broadcast %61 : vector<1x1x4xf32> to vector<8x8x4xf32>
    %63 = arith.mulf %58, %62 : vector<8x8x4xf32>
    %64 = arith.addf %56, %63 : vector<8x8x4xf32>
    %c0_44 = arith.constant 0 : index
    %c1_45 = arith.constant 1 : index
    %c1_46 = arith.constant 1 : index
    %c0_47 = arith.constant 0 : index
    %65 = vector.load %arg1[%c0_44, %c1_45, %c1_46, %c0_47] : memref<1x36x9x4xf32, #tpu.memory_space<vmem>>, vector<1x8x8x4xf32>
    %66 = vector.shape_cast %65 : vector<1x8x8x4xf32> to vector<8x8x4xf32>
    %c8 = arith.constant 8 : index
    %c0_48 = arith.constant 0 : index
    %c0_49 = arith.constant 0 : index
    %67 = vector.load %arg3[%c8, %c0_48, %c0_49] : memref<9x1x4xf32, #tpu.memory_space<vmem>>, vector<1x1x4xf32>
    %68 = vector.shape_cast %67 : vector<1x1x4xf32> to vector<1x4xf32>
    %69 = vector.shape_cast %68 : vector<1x4xf32> to vector<1x1x4xf32>
    %70 = vector.broadcast %69 : vector<1x1x4xf32> to vector<8x8x4xf32>
    %71 = arith.mulf %66, %70 : vector<8x8x4xf32>
    %72 = arith.addf %64, %71 : vector<8x8x4xf32>
    %73 = vector.shape_cast %72 : vector<8x8x4xf32> to vector<64x4xf32>
    %c0_50 = arith.constant 0 : index
    %c0_51 = arith.constant 0 : index
    %74 = vector.load %arg4[%c0_50, %c0_51] : memref<4x4xf32, #tpu.memory_space<vmem>>, vector<4x4xf32>
    %cst_52 = arith.constant dense<0.000000e+00> : vector<64x4xf32>
    %75 = tpu.matmul %73, %74, %cst_52 {dimension_numbers = #tpu.dot_dimension_numbers<[1], [0], [0], [1], [0, 0, 1, 1], [], []>} : vector<64x4xf32>, vector<4x4xf32>, vector<64x4xf32> -> vector<64x4xf32>
    %c0_53 = arith.constant 0 : index
    %c0_54 = arith.constant 0 : index
    %76 = vector.load %arg5[%c0_53, %c0_54] : memref<1x4xf32, #tpu.memory_space<vmem>>, vector<1x4xf32>
    %77 = vector.broadcast %76 : vector<1x4xf32> to vector<64x4xf32>
    %78 = arith.addf %75, %77 : vector<64x4xf32>
    %cst_55 = arith.constant 0.000000e+00 : f32
    %79 = vector.broadcast %cst_55 : f32 to vector<64x4xf32>
    %80 = arith.subf %79, %78 : vector<64x4xf32>
    %81 = math.exp %80 : vector<64x4xf32>
    %cst_56 = arith.constant 1.000000e+00 : f32
    %82 = vector.broadcast %cst_56 : f32 to vector<64x4xf32>
    %83 = arith.addf %82, %81 : vector<64x4xf32>
    %84 = tpu.reciprocal %83 : vector<64x4xf32> -> vector<64x4xf32>
    %85 = arith.mulf %78, %84 : vector<64x4xf32>
    %c0_57 = arith.constant 0 : index
    %c0_58 = arith.constant 0 : index
    %c0_59 = arith.constant 0 : index
    %86 = vector.load %arg9[%c0_57, %c0_58, %c0_59] : memref<1x64x4xf32, #tpu.memory_space<vmem>>, vector<1x64x4xf32>
    %87 = vector.shape_cast %86 : vector<1x64x4xf32> to vector<64x4xf32>
    %88 = vector.shape_cast %85 : vector<64x4xf32> to vector<1x64x4xf32>
    tpu.vector_store %arg9[%c0_57, %c0_58, %c0_59], %88 {strides = array<i32>} : memref<1x64x4xf32, #tpu.memory_space<vmem>>, vector<1x64x4xf32>,
    %cst_60 = arith.constant 0.000000e+00 : f32
    %89 = vector.broadcast %cst_60 : f32 to vector<8x8x4xf32>
    %c0_61 = arith.constant 0 : index
    %c0_62 = arith.constant 0 : index
    %c0_63 = arith.constant 0 : index
    %c0_64 = arith.constant 0 : index
    %90 = vector.load %arg2[%c0_61, %c0_62, %c0_63, %c0_64] : memref<1x36x9x4xf32, #tpu.memory_space<vmem>>, vector<1x8x8x4xf32>
    %91 = vector.shape_cast %90 : vector<1x8x8x4xf32> to vector<8x8x4xf32>
    %c0_65 = arith.constant 0 : index
    %c0_66 = arith.constant 0 : index
    %c0_67 = arith.constant 0 : index
    %92 = vector.load %arg6[%c0_65, %c0_66, %c0_67] : memref<9x1x4xf32, #tpu.memory_space<vmem>>, vector<1x1x4xf32>
    %93 = vector.shape_cast %92 : vector<1x1x4xf32> to vector<1x4xf32>
    %94 = vector.shape_cast %93 : vector<1x4xf32> to vector<1x1x4xf32>
    %95 = vector.broadcast %94 : vector<1x1x4xf32> to vector<8x8x4xf32>
    %96 = arith.mulf %91, %95 : vector<8x8x4xf32>
    %97 = arith.addf %89, %96 : vector<8x8x4xf32>
    %c0_68 = arith.constant 0 : index
    %c9_69 = arith.constant 9 : index
    %c0_70 = arith.constant 0 : index
    %c0_71 = arith.constant 0 : index
    %98 = vector.load %arg2[%c0_68, %c9_69, %c0_70, %c0_71] : memref<1x36x9x4xf32, #tpu.memory_space<vmem>>, vector<1x8x8x4xf32>
    %99 = vector.shape_cast %98 : vector<1x8x8x4xf32> to vector<8x8x4xf32>
    %c1_72 = arith.constant 1 : index
    %c0_73 = arith.constant 0 : index
    %c0_74 = arith.constant 0 : index
    %100 = vector.load %arg6[%c1_72, %c0_73, %c0_74] : memref<9x1x4xf32, #tpu.memory_space<vmem>>, vector<1x1x4xf32>
    %101 = vector.shape_cast %100 : vector<1x1x4xf32> to vector<1x4xf32>
    %102 = vector.shape_cast %101 : vector<1x4xf32> to vector<1x1x4xf32>
    %103 = vector.broadcast %102 : vector<1x1x4xf32> to vector<8x8x4xf32>
    %104 = arith.mulf %99, %103 : vector<8x8x4xf32>
    %105 = arith.addf %97, %104 : vector<8x8x4xf32>
    %c0_75 = arith.constant 0 : index
    %c0_76 = arith.constant 0 : index
    %c1_77 = arith.constant 1 : index
    %c0_78 = arith.constant 0 : index
    %106 = vector.load %arg2[%c0_75, %c0_76, %c1_77, %c0_78] : memref<1x36x9x4xf32, #tpu.memory_space<vmem>>, vector<1x8x8x4xf32>
    %107 = vector.shape_cast %106 : vector<1x8x8x4xf32> to vector<8x8x4xf32>
    %c2_79 = arith.constant 2 : index
    %c0_80 = arith.constant 0 : index
    %c0_81 = arith.constant 0 : index
    %108 = vector.load %arg6[%c2_79, %c0_80, %c0_81] : memref<9x1x4xf32, #tpu.memory_space<vmem>>, vector<1x1x4xf32>
    %109 = vector.shape_cast %108 : vector<1x1x4xf32> to vector<1x4xf32>
    %110 = vector.shape_cast %109 : vector<1x4xf32> to vector<1x1x4xf32>
    %111 = vector.broadcast %110 : vector<1x1x4xf32> to vector<8x8x4xf32>
    %112 = arith.mulf %107, %111 : vector<8x8x4xf32>
    %113 = arith.addf %105, %112 : vector<8x8x4xf32>
    %c0_82 = arith.constant 0 : index
    %c18_83 = arith.constant 18 : index
    %c0_84 = arith.constant 0 : index
    %c0_85 = arith.constant 0 : index
    %114 = vector.load %arg2[%c0_82, %c18_83, %c0_84, %c0_85] : memref<1x36x9x4xf32, #tpu.memory_space<vmem>>, vector<1x8x8x4xf32>
    %115 = vector.shape_cast %114 : vector<1x8x8x4xf32> to vector<8x8x4xf32>
    %c3_86 = arith.constant 3 : index
    %c0_87 = arith.constant 0 : index
    %c0_88 = arith.constant 0 : index
    %116 = vector.load %arg6[%c3_86, %c0_87, %c0_88] : memref<9x1x4xf32, #tpu.memory_space<vmem>>, vector<1x1x4xf32>
    %117 = vector.shape_cast %116 : vector<1x1x4xf32> to vector<1x4xf32>
    %118 = vector.shape_cast %117 : vector<1x4xf32> to vector<1x1x4xf32>
    %119 = vector.broadcast %118 : vector<1x1x4xf32> to vector<8x8x4xf32>
    %120 = arith.mulf %115, %119 : vector<8x8x4xf32>
    %121 = arith.addf %113, %120 : vector<8x8x4xf32>
    %c0_89 = arith.constant 0 : index
    %c27_90 = arith.constant 27 : index
    %c0_91 = arith.constant 0 : index
    %c0_92 = arith.constant 0 : index
    %122 = vector.load %arg2[%c0_89, %c27_90, %c0_91, %c0_92] : memref<1x36x9x4xf32, #tpu.memory_space<vmem>>, vector<1x8x8x4xf32>
    %123 = vector.shape_cast %122 : vector<1x8x8x4xf32> to vector<8x8x4xf32>
    %c4_93 = arith.constant 4 : index
    %c0_94 = arith.constant 0 : index
    %c0_95 = arith.constant 0 : index
    %124 = vector.load %arg6[%c4_93, %c0_94, %c0_95] : memref<9x1x4xf32, #tpu.memory_space<vmem>>, vector<1x1x4xf32>
    %125 = vector.shape_cast %124 : vector<1x1x4xf32> to vector<1x4xf32>
    %126 = vector.shape_cast %125 : vector<1x4xf32> to vector<1x1x4xf32>
    %127 = vector.broadcast %126 : vector<1x1x4xf32> to vector<8x8x4xf32>
    %128 = arith.mulf %123, %127 : vector<8x8x4xf32>
    %129 = arith.addf %121, %128 : vector<8x8x4xf32>
    %c0_96 = arith.constant 0 : index
    %c18_97 = arith.constant 18 : index
    %c1_98 = arith.constant 1 : index
    %c0_99 = arith.constant 0 : index
    %130 = vector.load %arg2[%c0_96, %c18_97, %c1_98, %c0_99] : memref<1x36x9x4xf32, #tpu.memory_space<vmem>>, vector<1x8x8x4xf32>
    %131 = vector.shape_cast %130 : vector<1x8x8x4xf32> to vector<8x8x4xf32>
    %c5_100 = arith.constant 5 : index
    %c0_101 = arith.constant 0 : index
    %c0_102 = arith.constant 0 : index
    %132 = vector.load %arg6[%c5_100, %c0_101, %c0_102] : memref<9x1x4xf32, #tpu.memory_space<vmem>>, vector<1x1x4xf32>
    %133 = vector.shape_cast %132 : vector<1x1x4xf32> to vector<1x4xf32>
    %134 = vector.shape_cast %133 : vector<1x4xf32> to vector<1x1x4xf32>
    %135 = vector.broadcast %134 : vector<1x1x4xf32> to vector<8x8x4xf32>
    %136 = arith.mulf %131, %135 : vector<8x8x4xf32>
    %137 = arith.addf %129, %136 : vector<8x8x4xf32>
    %c0_103 = arith.constant 0 : index
    %c1_104 = arith.constant 1 : index
    %c0_105 = arith.constant 0 : index
    %c0_106 = arith.constant 0 : index
    %138 = vector.load %arg2[%c0_103, %c1_104, %c0_105, %c0_106] : memref<1x36x9x4xf32, #tpu.memory_space<vmem>>, vector<1x8x8x4xf32>
    %139 = vector.shape_cast %138 : vector<1x8x8x4xf32> to vector<8x8x4xf32>
    %c6_107 = arith.constant 6 : index
    %c0_108 = arith.constant 0 : index
    %c0_109 = arith.constant 0 : index
    %140 = vector.load %arg6[%c6_107, %c0_108, %c0_109] : memref<9x1x4xf32, #tpu.memory_space<vmem>>, vector<1x1x4xf32>
    %141 = vector.shape_cast %140 : vector<1x1x4xf32> to vector<1x4xf32>
    %142 = vector.shape_cast %141 : vector<1x4xf32> to vector<1x1x4xf32>
    %143 = vector.broadcast %142 : vector<1x1x4xf32> to vector<8x8x4xf32>
    %144 = arith.mulf %139, %143 : vector<8x8x4xf32>
    %145 = arith.addf %137, %144 : vector<8x8x4xf32>
    %c0_110 = arith.constant 0 : index
    %c10_111 = arith.constant 10 : index
    %c0_112 = arith.constant 0 : index
    %c0_113 = arith.constant 0 : index
    %146 = vector.load %arg2[%c0_110, %c10_111, %c0_112, %c0_113] : memref<1x36x9x4xf32, #tpu.memory_space<vmem>>, vector<1x8x8x4xf32>
    %147 = vector.shape_cast %146 : vector<1x8x8x4xf32> to vector<8x8x4xf32>
    %c7_114 = arith.constant 7 : index
    %c0_115 = arith.constant 0 : index
    %c0_116 = arith.constant 0 : index
    %148 = vector.load %arg6[%c7_114, %c0_115, %c0_116] : memref<9x1x4xf32, #tpu.memory_space<vmem>>, vector<1x1x4xf32>
    %149 = vector.shape_cast %148 : vector<1x1x4xf32> to vector<1x4xf32>
    %150 = vector.shape_cast %149 : vector<1x4xf32> to vector<1x1x4xf32>
    %151 = vector.broadcast %150 : vector<1x1x4xf32> to vector<8x8x4xf32>
    %152 = arith.mulf %147, %151 : vector<8x8x4xf32>
    %153 = arith.addf %145, %152 : vector<8x8x4xf32>
    %c0_117 = arith.constant 0 : index
    %c1_118 = arith.constant 1 : index
    %c1_119 = arith.constant 1 : index
    %c0_120 = arith.constant 0 : index
    %154 = vector.load %arg2[%c0_117, %c1_118, %c1_119, %c0_120] : memref<1x36x9x4xf32, #tpu.memory_space<vmem>>, vector<1x8x8x4xf32>
    %155 = vector.shape_cast %154 : vector<1x8x8x4xf32> to vector<8x8x4xf32>
    %c8_121 = arith.constant 8 : index
    %c0_122 = arith.constant 0 : index
    %c0_123 = arith.constant 0 : index
    %156 = vector.load %arg6[%c8_121, %c0_122, %c0_123] : memref<9x1x4xf32, #tpu.memory_space<vmem>>, vector<1x1x4xf32>
    %157 = vector.shape_cast %156 : vector<1x1x4xf32> to vector<1x4xf32>
    %158 = vector.shape_cast %157 : vector<1x4xf32> to vector<1x1x4xf32>
    %159 = vector.broadcast %158 : vector<1x1x4xf32> to vector<8x8x4xf32>
    %160 = arith.mulf %155, %159 : vector<8x8x4xf32>
    %161 = arith.addf %153, %160 : vector<8x8x4xf32>
    %162 = vector.shape_cast %161 : vector<8x8x4xf32> to vector<64x4xf32>
    %c0_124 = arith.constant 0 : index
    %c0_125 = arith.constant 0 : index
    %163 = vector.load %arg7[%c0_124, %c0_125] : memref<4x4xf32, #tpu.memory_space<vmem>>, vector<4x4xf32>
    %cst_126 = arith.constant dense<0.000000e+00> : vector<64x4xf32>
    %164 = tpu.matmul %162, %163, %cst_126 {dimension_numbers = #tpu.dot_dimension_numbers<[1], [0], [0], [1], [0, 0, 1, 1], [], []>} : vector<64x4xf32>, vector<4x4xf32>, vector<64x4xf32> -> vector<64x4xf32>
    %c0_127 = arith.constant 0 : index
    %c0_128 = arith.constant 0 : index
    %165 = vector.load %arg8[%c0_127, %c0_128] : memref<1x4xf32, #tpu.memory_space<vmem>>, vector<1x4xf32>
    %166 = vector.broadcast %165 : vector<1x4xf32> to vector<64x4xf32>
    %167 = arith.addf %164, %166 : vector<64x4xf32>
    %cst_129 = arith.constant 0.000000e+00 : f32
    %168 = vector.broadcast %cst_129 : f32 to vector<64x4xf32>
    %169 = arith.subf %168, %167 : vector<64x4xf32>
    %170 = math.exp %169 : vector<64x4xf32>
    %cst_130 = arith.constant 1.000000e+00 : f32
    %171 = vector.broadcast %cst_130 : f32 to vector<64x4xf32>
    %172 = arith.addf %171, %170 : vector<64x4xf32>
    %173 = tpu.reciprocal %172 : vector<64x4xf32> -> vector<64x4xf32>
    %174 = arith.mulf %167, %173 : vector<64x4xf32>
    %c0_131 = arith.constant 0 : index
    %c0_132 = arith.constant 0 : index
    %c0_133 = arith.constant 0 : index
    %175 = vector.load %arg10[%c0_131, %c0_132, %c0_133] : memref<1x64x4xf32, #tpu.memory_space<vmem>>, vector<1x64x4xf32>
    %176 = vector.shape_cast %175 : vector<1x64x4xf32> to vector<64x4xf32>
    %177 = vector.shape_cast %174 : vector<64x4xf32> to vector<1x64x4xf32>
    tpu.vector_store %arg10[%c0_131, %c0_132, %c0_133], %177 {strides = array<i32>} : memref<1x64x4xf32, #tpu.memory_space<vmem>>, vector<1x64x4xf32>,
    return
  }
  func.func @transform_0(%arg0: i32) -> (i32, i32, i32, i32) {
    %c0_i32 = arith.constant 0 : i32
    %c0_i32_0 = arith.constant 0 : i32
    %c0_i32_1 = arith.constant 0 : i32
    %c0_i32_2 = arith.constant 0 : i32
    return %arg0, %c0_i32, %c0_i32_0, %c0_i32_1 : i32, i32, i32, i32
  }
  func.func @transform_1(%arg0: i32) -> (i32, i32, i32, i32) {
    %c0_i32 = arith.constant 0 : i32
    %c0_i32_0 = arith.constant 0 : i32
    %c0_i32_1 = arith.constant 0 : i32
    %c0_i32_2 = arith.constant 0 : i32
    return %arg0, %c0_i32, %c0_i32_0, %c0_i32_1 : i32, i32, i32, i32
  }
  func.func @transform_2(%arg0: i32) -> (i32, i32, i32) {
    %c0_i32 = arith.constant 0 : i32
    %c0_i32_0 = arith.constant 0 : i32
    %c0_i32_1 = arith.constant 0 : i32
    %c0_i32_2 = arith.constant 0 : i32
    return %c0_i32, %c0_i32_0, %c0_i32_1 : i32, i32, i32
  }
  func.func @transform_3(%arg0: i32) -> (i32, i32) {
    %c0_i32 = arith.constant 0 : i32
    %c0_i32_0 = arith.constant 0 : i32
    %c0_i32_1 = arith.constant 0 : i32
    return %c0_i32, %c0_i32_0 : i32, i32
  }
  func.func @transform_4(%arg0: i32) -> (i32, i32) {
    %c0_i32 = arith.constant 0 : i32
    %c0_i32_0 = arith.constant 0 : i32
    %c0_i32_1 = arith.constant 0 : i32
    return %c0_i32, %c0_i32_0 : i32, i32
  }
  func.func @transform_5(%arg0: i32) -> (i32, i32, i32) {
    %c0_i32 = arith.constant 0 : i32
    %c0_i32_0 = arith.constant 0 : i32
    %c0_i32_1 = arith.constant 0 : i32
    %c0_i32_2 = arith.constant 0 : i32
    return %c0_i32, %c0_i32_0, %c0_i32_1 : i32, i32, i32
  }
  func.func @transform_6(%arg0: i32) -> (i32, i32) {
    %c0_i32 = arith.constant 0 : i32
    %c0_i32_0 = arith.constant 0 : i32
    %c0_i32_1 = arith.constant 0 : i32
    return %c0_i32, %c0_i32_0 : i32, i32
  }
  func.func @transform_7(%arg0: i32) -> (i32, i32) {
    %c0_i32 = arith.constant 0 : i32
    %c0_i32_0 = arith.constant 0 : i32
    %c0_i32_1 = arith.constant 0 : i32
    return %c0_i32, %c0_i32_0 : i32, i32
  }
  func.func @transform_8(%arg0: i32) -> (i32, i32, i32) {
    %c0_i32 = arith.constant 0 : i32
    %c0_i32_0 = arith.constant 0 : i32
    %c0_i32_1 = arith.constant 0 : i32
    return %arg0, %c0_i32, %c0_i32_0 : i32, i32, i32
  }
  func.func @transform_9(%arg0: i32) -> (i32, i32, i32) {
    %c0_i32 = arith.constant 0 : i32
    %c0_i32_0 = arith.constant 0 : i32
    %c0_i32_1 = arith.constant 0 : i32
    return %arg0, %c0_i32, %c0_i32_0 : i32, i32, i32
  }
}

</mosaic_0001>

<llo_original>
// kernel: residual_downsample.2
$region0: #{residual_downsample.2}
  #allocation0 [shape = 'u32[]', space=smem, size = 0x4, offset = 0x4, fixed_abs, tag = 'smem constant byte address 0x4 - core index']
  #allocation1 [shape = 'u32[144,128]{1,0:T(1,128)}', space=vmem, size = 0x12000, scoped, tag = 'internal scratch']
  %s0 = inlined_call_operand.vmem [shape: f32[512,4], index: 0, kind: input, shape index: {}]
  %s1 = inlined_call_operand.vmem [shape: f32[4,4], index: 1, kind: input, shape index: {}]
  %s2 = inlined_call_operand.vmem [shape: f32[1,4], index: 2, kind: input, shape index: {}]
  %s3 = inlined_call_operand.vmem [shape: f32[512,4], index: 3, kind: output, shape index: {}]
  %s4 = sld [smem:[#allocation0]]
  $region45: #{residual_downsample.2} parent=0
    _
  %s6 = ssub.s32 1, %s4
  %s7 = scalar_select 0, %s6, %s4
  loop: start=0, step=1, limit=4
  $region2: #{residual_downsample.2} parent=0 // loop_pre_header
    _
  $region3: #{residual_downsample.2} parent=0 // loop_header
    %s9 = sphi 0, %s13
    %p10 = scmp.ge.s32.totalorder %s9, 4
    %s19 = sphi 0, %s21
    %s22 = sphi 0, %s19
    %s23 = sphi 0, %s22
    %s39 = sphi 0, %s23
    %s43 = sphi 0, %s43
    %s45 = sphi 0, %s43
    %s46 = sphi 0, %s45
    %s60 = sphi 0, %s46
    %s64 = sphi 0, %s64
    %s66 = sphi 0, %s64
    %s67 = sphi 0, %s66
    %s81 = sphi 0, %s67
    %s87 = sphi 0, %s89
    %s90 = sphi 0, %s87
    %s91 = sphi 0, %s90
    %s107 = sphi 0, %s91
  $region4: #{residual_downsample.2} parent=0 // loop_header_branch
    %12 = sbr.rel (%p10) target = $region8
  $region5: #{residual_downsample.2} parent=0 // loop_body
    %s14 = ssub.s32 %s9, 1
    %s15 = ssub.s32 %s9, 2
    %s16 = sadd.s32 %s9, 1
    %s17 = ssub.s32 %s9, %s16
    %p18 = scmp.eq.s32.totalorder %s17, 0
    %s20 = sadd.s32 %s19, 1
    %s21 = scalar_select %p18, %s19, %s20
    %p24 = pneg %p18
    %p25 = scmp.eq.s32.totalorder %s9, 1
    %p26 = por %p24, %p25
    %p27 = scmp.ne.s32.totalorder %s19, %s22
    %p28 = scmp.eq.s32.totalorder %s9, 0
    %p29 = por %p27, %p28
    %p30 = scmp.ne.s32.totalorder %s19, %s22
    %p31 = scmp.eq.s32.totalorder %s14, 1
    %p32 = por %p30, %p31
    %p33 = scmp.ne.s32.totalorder %s22, %s23
    %p34 = scmp.eq.s32.totalorder %s14, 0
    %p35 = por %p33, %p34
    %p36 = scmp.ne.s32.totalorder %s22, %s23
    %p37 = scmp.eq.s32.totalorder %s15, 1
    %p38 = por %p36, %p37
    %p40 = scmp.ne.s32.totalorder %s23, %s39
    %p41 = scmp.eq.s32.totalorder %s15, 0
    %p42 = por %p40, %p41
    %s44 = sadd.s32 %s43, 1
    %p47 = scmp.eq.s32.totalorder %s9, 1
    %p48 = scmp.ne.s32.totalorder %s43, %s45
    %p49 = scmp.eq.s32.totalorder %s9, 0
    %p50 = por %p48, %p49
    %p51 = scmp.ne.s32.totalorder %s43, %s45
    %p52 = scmp.eq.s32.totalorder %s14, 1
    %p53 = por %p51, %p52
    %p54 = scmp.ne.s32.totalorder %s45, %s46
    %p55 = scmp.eq.s32.totalorder %s14, 0
    %p56 = por %p54, %p55
    %p57 = scmp.ne.s32.totalorder %s45, %s46
    %p58 = scmp.eq.s32.totalorder %s15, 1
    %p59 = por %p57, %p58
    %p61 = scmp.ne.s32.totalorder %s46, %s60
    %p62 = scmp.eq.s32.totalorder %s15, 0
    %p63 = por %p61, %p62
    %s65 = sadd.s32 %s64, 1
    %p68 = scmp.eq.s32.totalorder %s9, 1
    %p69 = scmp.ne.s32.totalorder %s64, %s66
    %p70 = scmp.eq.s32.totalorder %s9, 0
    %p71 = por %p69, %p70
    %p72 = scmp.ne.s32.totalorder %s64, %s66
    %p73 = scmp.eq.s32.totalorder %s14, 1
    %p74 = por %p72, %p73
    %p75 = scmp.ne.s32.totalorder %s66, %s67
    %p76 = scmp.eq.s32.totalorder %s14, 0
    %p77 = por %p75, %p76
    %p78 = scmp.ne.s32.totalorder %s66, %s67
    %p79 = scmp.eq.s32.totalorder %s15, 1
    %p80 = por %p78, %p79
    %p82 = scmp.ne.s32.totalorder %s67, %s81
    %p83 = scmp.eq.s32.totalorder %s15, 0
    %p84 = por %p82, %p83
    %s85 = ssub.s32 %s9, %s16
    %p86 = scmp.eq.s32.totalorder %s85, 0
    %s88 = sadd.s32 %s87, 1
    %s89 = scalar_select %p86, %s87, %s88
    %p92 = pneg %p86
    %p93 = scmp.eq.s32.totalorder %s9, 1
    %p94 = por %p92, %p93
    %p95 = scmp.ne.s32.totalorder %s87, %s90
    %p96 = scmp.eq.s32.totalorder %s9, 0
    %p97 = por %p95, %p96
    %p98 = scmp.ne.s32.totalorder %s87, %s90
    %p99 = scmp.eq.s32.totalorder %s14, 1
    %p100 = por %p98, %p99
    %p101 = scmp.ne.s32.totalorder %s90, %s91
    %p102 = scmp.eq.s32.totalorder %s14, 0
    %p103 = por %p101, %p102
    %p104 = scmp.ne.s32.totalorder %s90, %s91
    %p105 = scmp.eq.s32.totalorder %s15, 1
    %p106 = por %p104, %p105
    %p108 = scmp.ne.s32.totalorder %s91, %s107
    %p109 = scmp.eq.s32.totalorder %s15, 0
    %p110 = por %p108, %p109
    %p111 = scmp.le.s32.totalorder 1, %s9
    %p112 = scmp.lt.s32.totalorder %s9, 3
    %p113 = pnand %p111, %p112
    %p114 = pneg %p113
    // Predicated region
    $region9: #{residual_downsample.2} parent=5 // pred_check
      _
    $region10: #{residual_downsample.2} parent=5 // pred_check_branch
      %116 = sbr.rel (%p113) target = $region12
    $region11: #{residual_downsample.2} parent=5 // pred_region
      %s117 = ssub.s32 %s9, 1
      // Predicated region
      $region13: #{residual_downsample.2} parent=11 // pred_check
        %p118 = pneg %p56
      $region14: #{residual_downsample.2} parent=11 // pred_check_branch
        %120 = sbr.rel (%p118) target = $region16
      $region15: #{residual_downsample.2} parent=11 // pred_region
        _
      $region16: #{residual_downsample.2} parent=11 // pred_fallthru
        _
      // Predicated region
      $region17: #{residual_downsample.2} parent=11 // pred_check
        %p121 = pneg %p77
      $region18: #{residual_downsample.2} parent=11 // pred_check_branch
        %123 = sbr.rel (%p121) target = $region20
      $region19: #{residual_downsample.2} parent=11 // pred_region
        _
      $region20: #{residual_downsample.2} parent=11 // pred_fallthru
        _
    $region12: #{residual_downsample.2} parent=5 // pred_fallthru
      _
    %p124 = scmp.lt.s32.totalorder %s9, 2
    // Predicated region
    $region21: #{residual_downsample.2} parent=5 // pred_check
      %p125 = pneg %p124
    $region22: #{residual_downsample.2} parent=5 // pred_check_branch
      %127 = sbr.rel (%p125) target = $region24
    $region23: #{residual_downsample.2} parent=5 // pred_region
      // Predicated region
      $region25: #{residual_downsample.2} parent=23 // pred_check
        %p128 = pneg %p29
      $region26: #{residual_downsample.2} parent=23 // pred_check_branch
        %130 = sbr.rel (%p128) target = $region28
      $region27: #{residual_downsample.2} parent=23 // pred_region
        %s131 = smul.u32 32, %s9
        %p132 = scmp.lt.s32.totalorder %s131, 63
        %s133 = scalar_select %p132, %s131, 63
        %s134 = smul.addr %s133, 8
        %s135 = scalar_lea.vmem %s0, %s134
        %s136 = smul.u32 32, %s9
      $region28: #{residual_downsample.2} parent=23 // pred_fallthru
        _
    $region24: #{residual_downsample.2} parent=5 // pred_fallthru
      _
    %p137 = scmp.le.s32.totalorder 1, %s9
    %p138 = scmp.lt.s32.totalorder %s9, 3
    %p139 = pnand %p137, %p138
    %p140 = pneg %p139
    // Predicated region
    $region29: #{residual_downsample.2} parent=5 // pred_check
      _
    $region30: #{residual_downsample.2} parent=5 // pred_check_branch
      %142 = sbr.rel (%p139) target = $region32
    $region31: #{residual_downsample.2} parent=5 // pred_region
      %s143 = ssub.s32 %s9, 1
      %s144 = smul.u32 32, %s14
      %p145 = scmp.lt.s32.totalorder %s144, 63
      %s146 = scalar_select %p145, %s144, 63
      %s147 = smul.addr %s146, 8
      %s148 = scalar_lea.vmem %s0, %s147
      %p149 = pneg %p35
      %p150 = pneg %p32
      %p151 = pneg %p56
      %p152 = pneg %p53
      %p153 = pneg %p77
      %p154 = pneg %p74
      %p155 = pneg %p103
      %p156 = pneg %p100
      %s157 = smul.u32 32, %s14
      %p158 = scmp.lt.s32.totalorder %s157, 63
      %s159 = scalar_select %p158, %s157, 63
      %s160 = smul.addr %s159, 8
      %s161 = scalar_lea.vmem %s3, %s160
      %s162 = smul.u32 32, %s14
      %p163 = scmp.lt.s32.totalorder %s162, 63
      %s164 = scalar_select %p163, %s162, 63
      %s165 = smul.addr %s164, 8
      %s166 = scalar_lea.vmem %s0, %s165
      %s167 = smul.u32 32, %s14
      %s168 = smul.u32 32, %s14
      %p169 = scmp.lt.s32.totalorder %s168, 63
      %s170 = scalar_select %p169, %s168, 63
      %s171 = smul.addr %s170, 8
      %s172 = scalar_lea.vmem %s3, %s171
      %s173 = smul.u32 32, %s14
      %v174 = vld [vmem:[%s166] sm:$0xff]
      %v175 = vld [vmem:[%s166 + $0x8] sm:$0xff]
      %v176 = vld [vmem:[%s166 + $0x10] sm:$0xff]
      %v177 = vld [vmem:[%s166 + $0x18] sm:$0xff]
      %v178 = vld [vmem:[%s166 + $0x20] sm:$0xff]
      %v179 = vld [vmem:[%s166 + $0x28] sm:$0xff]
      %v180 = vld [vmem:[%s166 + $0x30] sm:$0xff]
      %v181 = vld [vmem:[%s166 + $0x38] sm:$0xff]
      %v182 = vld [vmem:[%s166 + $0x40] sm:$0xff]
      %v183 = vld [vmem:[%s166 + $0x48] sm:$0xff]
      %v184 = vld [vmem:[%s166 + $0x50] sm:$0xff]
      %v185 = vld [vmem:[%s166 + $0x58] sm:$0xff]
      %v186 = vld [vmem:[%s166 + $0x60] sm:$0xff]
      %v187 = vld [vmem:[%s166 + $0x68] sm:$0xff]
      %v188 = vld [vmem:[%s166 + $0x70] sm:$0xff]
      %v189 = vld [vmem:[%s166 + $0x78] sm:$0xff]
      %v190 = vld [vmem:[%s166 + $0x80] sm:$0xff]
      %v191 = vld [vmem:[%s166 + $0x88] sm:$0xff]
      %v192 = vld [vmem:[%s166 + $0x90] sm:$0xff]
      %v193 = vld [vmem:[%s166 + $0x98] sm:$0xff]
      %v194 = vld [vmem:[%s166 + $0xa0] sm:$0xff]
      %v195 = vld [vmem:[%s166 + $0xa8] sm:$0xff]
      %v196 = vld [vmem:[%s166 + $0xb0] sm:$0xff]
      %v197 = vld [vmem:[%s166 + $0xb8] sm:$0xff]
      %v198 = vld [vmem:[%s166 + $0xc0] sm:$0xff]
      %v199 = vld [vmem:[%s166 + $0xc8] sm:$0xff]
      %v200 = vld [vmem:[%s166 + $0xd0] sm:$0xff]
      %v201 = vld [vmem:[%s166 + $0xd8] sm:$0xff]
      %v202 = vld [vmem:[%s166 + $0xe0] sm:$0xff]
      %v203 = vld [vmem:[%s166 + $0xe8] sm:$0xff]
      %v204 = vld [vmem:[%s166 + $0xf0] sm:$0xff]
      %v205 = vld [vmem:[%s166 + $0xf8] sm:$0xff]
      %v206 = vld [vmem:[%s1] sm:$0xf]
      %v207 = vld [vmem:[%s2] sm:$0x1]
      %v209 = vlaneseq
      %v210 = vshrl.u32 %v209, 7
      %v211 = vsub.s32 0, %v210
      %v212 = vrot.slane %v207, %v211
      %vm214 = vcmask 31744
      %v216 = vsel %vm214, %v174, 0
      %v219 = vsel %vm214, %v175, 0
      %v222 = vsel %vm214, %v176, 0
      %v225 = vsel %vm214, %v177, 0
      %v228 = vsel %vm214, %v178, 0
      %v231 = vsel %vm214, %v179, 0
      %v234 = vsel %vm214, %v180, 0
      %v237 = vsel %vm214, %v181, 0
      %v240 = vsel %vm214, %v182, 0
      %v243 = vsel %vm214, %v183, 0
      %v246 = vsel %vm214, %v184, 0
      %v249 = vsel %vm214, %v185, 0
      %v252 = vsel %vm214, %v186, 0
      %v255 = vsel %vm214, %v187, 0
      %v258 = vsel %vm214, %v188, 0
      %v261 = vsel %vm214, %v189, 0
      %v264 = vsel %vm214, %v190, 0
      %v267 = vsel %vm214, %v191, 0
      %v270 = vsel %vm214, %v192, 0
      %v273 = vsel %vm214, %v193, 0
      %v276 = vsel %vm214, %v194, 0
      %v279 = vsel %vm214, %v195, 0
      %v282 = vsel %vm214, %v196, 0
      %v285 = vsel %vm214, %v197, 0
      %v288 = vsel %vm214, %v198, 0
      %v291 = vsel %vm214, %v199, 0
      %v294 = vsel %vm214, %v200, 0
      %v297 = vsel %vm214, %v201, 0
      %v300 = vsel %vm214, %v202, 0
      %v303 = vsel %vm214, %v203, 0
      %v306 = vsel %vm214, %v204, 0
      %v309 = vsel %vm214, %v205, 0
      %vm311 = vcmask 1043456
      %v313 = vsel %vm311, %v206, 0
      %315 = vmatprep.subr.mxu0 0.0
      %316 = vmatpush1.msra.mxu0 %v313
      %317 = vmatprep.subr.mxu0 0.0
      %318 = vmatpush1.msra.mxu0 0.0
      %319 = vmatprep.subr.mxu0 0.0
      %320 = vmatpush1.msra.mxu0 0.0
      %321 = vmatprep.subr.mxu0 0.0
      %322 = vmatpush1.msra.mxu0 0.0
      %323 = vmatprep.subr.mxu0 0.0
      %324 = vmatpush1.msra.mxu0 0.0
      %325 = vmatprep.subr.mxu0 0.0
      %326 = vmatpush1.msra.mxu0 0.0
      %327 = vmatprep.subr.mxu0 0.0
      %328 = vmatpush1.msra.mxu0 0.0
      %329 = vmatprep.subr.mxu0 0.0
      %330 = vmatpush1.msra.mxu0 0.0
      %331 = vmatprep.subr.mxu0 0.0
      %332 = vmatpush1.msra.mxu0 0.0
      %333 = vmatprep.subr.mxu0 0.0
      %334 = vmatpush1.msra.mxu0 0.0
      %335 = vmatprep.subr.mxu0 0.0
      %336 = vmatpush1.msra.mxu0 0.0
      %337 = vmatprep.subr.mxu0 0.0
      %338 = vmatpush1.msra.mxu0 0.0
      %339 = vmatprep.subr.mxu0 0.0
      %340 = vmatpush1.msra.mxu0 0.0
      %341 = vmatprep.subr.mxu0 0.0
      %342 = vmatpush1.msra.mxu0 0.0
      %343 = vmatprep.subr.mxu0 0.0
      %344 = vmatpush1.msra.mxu0 0.0
      %345 = vmatprep.subr.mxu0 0.0
      %346 = vmatpush1.msra.mxu0 0.0
      %347 = vmatprep.subr.mxu0 0.0
      %348 = vmatpush1.msra.mxu0 0.0
      %349 = vmatprep.subr.mxu0 0.0
      %350 = vmatpush1.msra.mxu0 0.0
      %351 = vmatprep.subr.mxu0 0.0
      %352 = vmatpush1.msra.mxu0 0.0
      %353 = vmatprep.subr.mxu0 0.0
      %354 = vmatpush1.msra.mxu0 0.0
      %355 = vmatprep.subr.mxu0 0.0
      %356 = vmatpush1.msra.mxu0 0.0
      %357 = vmatprep.subr.mxu0 0.0
      %358 = vmatpush1.msra.mxu0 0.0
      %359 = vmatprep.subr.mxu0 0.0
      %360 = vmatpush1.msra.mxu0 0.0
      %361 = vmatprep.subr.mxu0 0.0
      %362 = vmatpush1.msra.mxu0 0.0
      %363 = vmatprep.subr.mxu0 0.0
      %364 = vmatpush1.msra.mxu0 0.0
      %365 = vmatprep.subr.mxu0 0.0
      %366 = vmatpush1.msra.mxu0 0.0
      %367 = vmatprep.subr.mxu0 0.0
      %368 = vmatpush1.msra.mxu0 0.0
      %369 = vmatprep.subr.mxu0 0.0
      %370 = vmatpush1.msra.mxu0 0.0
      %371 = vmatprep.subr.mxu0 0.0
      %372 = vmatpush1.msra.mxu0 0.0
      %373 = vmatprep.subr.mxu0 0.0
      %374 = vmatpush1.msra.mxu0 0.0
      %375 = vmatprep.subr.mxu0 0.0
      %376 = vmatpush1.msra.mxu0 0.0
      %377 = vmatprep.subr.mxu0 0.0
      %378 = vmatpush1.msra.mxu0 0.0
      %379 = vmatprep.mubr.f32.mxu0 0.0
      %380 = vmatmul.mubr.f32.gmra.mrb[0].mxu0 %v216
      %v381 = vpop.f32.mrb[0].mxu0
      %v382 = vadd.f32 %v212, %v381
      %v383 = vpop.f32.mrb[0].mxu0
      %384 = vmatprep.mubr.f32.mxu0 0.0
      %385 = vmatmul.mubr.f32.gmra.mrb[0].mxu0 %v219
      %v386 = vpop.f32.mrb[0].mxu0
      %v387 = vadd.f32 %v212, %v386
      %v388 = vpop.f32.mrb[0].mxu0
      %389 = vmatprep.mubr.f32.mxu0 0.0
      %390 = vmatmul.mubr.f32.gmra.mrb[0].mxu0 %v222
      %v391 = vpop.f32.mrb[0].mxu0
      %v392 = vadd.f32 %v212, %v391
      %v393 = vpop.f32.mrb[0].mxu0
      %394 = vmatprep.mubr.f32.mxu0 0.0
      %395 = vmatmul.mubr.f32.gmra.mrb[0].mxu0 %v225
      %v396 = vpop.f32.mrb[0].mxu0
      %v397 = vadd.f32 %v212, %v396
      %v398 = vpop.f32.mrb[0].mxu0
      %399 = vmatprep.mubr.f32.mxu0 0.0
      %400 = vmatmul.mubr.f32.gmra.mrb[0].mxu0 %v228
      %v401 = vpop.f32.mrb[0].mxu0
      %v402 = vadd.f32 %v212, %v401
      %v403 = vpop.f32.mrb[0].mxu0
      %404 = vmatprep.mubr.f32.mxu0 0.0
      %405 = vmatmul.mubr.f32.gmra.mrb[0].mxu0 %v231
      %v406 = vpop.f32.mrb[0].mxu0
      %v407 = vadd.f32 %v212, %v406
      %v408 = vpop.f32.mrb[0].mxu0
      %409 = vmatprep.mubr.f32.mxu0 0.0
      %410 = vmatmul.mubr.f32.gmra.mrb[0].mxu0 %v234
      %v411 = vpop.f32.mrb[0].mxu0
      %v412 = vadd.f32 %v212, %v411
      %v413 = vpop.f32.mrb[0].mxu0
      %414 = vmatprep.mubr.f32.mxu0 0.0
      %415 = vmatmul.mubr.f32.gmra.mrb[0].mxu0 %v237
      %v416 = vpop.f32.mrb[0].mxu0
      %v417 = vadd.f32 %v212, %v416
      %v418 = vpop.f32.mrb[0].mxu0
      %419 = vmatprep.mubr.f32.mxu0 0.0
      %420 = vmatmul.mubr.f32.gmra.mrb[0].mxu0 %v240
      %v421 = vpop.f32.mrb[0].mxu0
      %v422 = vadd.f32 %v212, %v421
      %v423 = vpop.f32.mrb[0].mxu0
      %424 = vmatprep.mubr.f32.mxu0 0.0
      %425 = vmatmul.mubr.f32.gmra.mrb[0].mxu0 %v243
      %v426 = vpop.f32.mrb[0].mxu0
      %v427 = vadd.f32 %v212, %v426
      %v428 = vpop.f32.mrb[0].mxu0
      %429 = vmatprep.mubr.f32.mxu0 0.0
      %430 = vmatmul.mubr.f32.gmra.mrb[0].mxu0 %v246
      %v431 = vpop.f32.mrb[0].mxu0
      %v432 = vadd.f32 %v212, %v431
      %v433 = vpop.f32.mrb[0].mxu0
      %434 = vmatprep.mubr.f32.mxu0 0.0
      %435 = vmatmul.mubr.f32.gmra.mrb[0].mxu0 %v249
      %v436 = vpop.f32.mrb[0].mxu0
      %v437 = vadd.f32 %v212, %v436
      %v438 = vpop.f32.mrb[0].mxu0
      %439 = vmatprep.mubr.f32.mxu0 0.0
      %440 = vmatmul.mubr.f32.gmra.mrb[0].mxu0 %v252
      %v441 = vpop.f32.mrb[0].mxu0
      %v442 = vadd.f32 %v212, %v441
      %v443 = vpop.f32.mrb[0].mxu0
      %444 = vmatprep.mubr.f32.mxu0 0.0
      %445 = vmatmul.mubr.f32.gmra.mrb[0].mxu0 %v255
      %v446 = vpop.f32.mrb[0].mxu0
      %v447 = vadd.f32 %v212, %v446
      %v448 = vpop.f32.mrb[0].mxu0
      %449 = vmatprep.mubr.f32.mxu0 0.0
      %450 = vmatmul.mubr.f32.gmra.mrb[0].mxu0 %v258
      %v451 = vpop.f32.mrb[0].mxu0
      %v452 = vadd.f32 %v212, %v451
      %v453 = vpop.f32.mrb[0].mxu0
      %454 = vmatprep.mubr.f32.mxu0 0.0
      %455 = vmatmul.mubr.f32.gmra.mrb[0].mxu0 %v261
      %v456 = vpop.f32.mrb[0].mxu0
      %v457 = vadd.f32 %v212, %v456
      %v458 = vpop.f32.mrb[0].mxu0
      %459 = vmatprep.mubr.f32.mxu0 0.0
      %460 = vmatmul.mubr.f32.gmra.mrb[0].mxu0 %v264
      %v461 = vpop.f32.mrb[0].mxu0
      %v462 = vadd.f32 %v212, %v461
      %v463 = vpop.f32.mrb[0].mxu0
      %464 = vmatprep.mubr.f32.mxu0 0.0
      %465 = vmatmul.mubr.f32.gmra.mrb[0].mxu0 %v267
      %v466 = vpop.f32.mrb[0].mxu0
      %v467 = vadd.f32 %v212, %v466
      %v468 = vpop.f32.mrb[0].mxu0
      %469 = vmatprep.mubr.f32.mxu0 0.0
      %470 = vmatmul.mubr.f32.gmra.mrb[0].mxu0 %v270
      %v471 = vpop.f32.mrb[0].mxu0
      %v472 = vadd.f32 %v212, %v471
      %v473 = vpop.f32.mrb[0].mxu0
      %474 = vmatprep.mubr.f32.mxu0 0.0
      %475 = vmatmul.mubr.f32.gmra.mrb[0].mxu0 %v273
      %v476 = vpop.f32.mrb[0].mxu0
      %v477 = vadd.f32 %v212, %v476
      %v478 = vpop.f32.mrb[0].mxu0
      %479 = vmatprep.mubr.f32.mxu0 0.0
      %480 = vmatmul.mubr.f32.gmra.mrb[0].mxu0 %v276
      %v481 = vpop.f32.mrb[0].mxu0
      %v482 = vadd.f32 %v212, %v481
      %v483 = vpop.f32.mrb[0].mxu0
      %484 = vmatprep.mubr.f32.mxu0 0.0
      %485 = vmatmul.mubr.f32.gmra.mrb[0].mxu0 %v279
      %v486 = vpop.f32.mrb[0].mxu0
      %v487 = vadd.f32 %v212, %v486
      %v488 = vpop.f32.mrb[0].mxu0
      %489 = vmatprep.mubr.f32.mxu0 0.0
      %490 = vmatmul.mubr.f32.gmra.mrb[0].mxu0 %v282
      %v491 = vpop.f32.mrb[0].mxu0
      %v492 = vadd.f32 %v212, %v491
      %v493 = vpop.f32.mrb[0].mxu0
      %494 = vmatprep.mubr.f32.mxu0 0.0
      %495 = vmatmul.mubr.f32.gmra.mrb[0].mxu0 %v285
      %v496 = vpop.f32.mrb[0].mxu0
      %v497 = vadd.f32 %v212, %v496
      %v498 = vpop.f32.mrb[0].mxu0
      %499 = vmatprep.mubr.f32.mxu0 0.0
      %500 = vmatmul.mubr.f32.gmra.mrb[0].mxu0 %v288
      %v501 = vpop.f32.mrb[0].mxu0
      %v502 = vadd.f32 %v212, %v501
      %v503 = vpop.f32.mrb[0].mxu0
      %504 = vmatprep.mubr.f32.mxu0 0.0
      %505 = vmatmul.mubr.f32.gmra.mrb[0].mxu0 %v291
      %v506 = vpop.f32.mrb[0].mxu0
      %v507 = vadd.f32 %v212, %v506
      %v508 = vpop.f32.mrb[0].mxu0
      %509 = vmatprep.mubr.f32.mxu0 0.0
      %510 = vmatmul.mubr.f32.gmra.mrb[0].mxu0 %v294
      %v511 = vpop.f32.mrb[0].mxu0
      %v512 = vadd.f32 %v212, %v511
      %v513 = vpop.f32.mrb[0].mxu0
      %514 = vmatprep.mubr.f32.mxu0 0.0
      %515 = vmatmul.mubr.f32.gmra.mrb[0].mxu0 %v297
      %v516 = vpop.f32.mrb[0].mxu0
      %v517 = vadd.f32 %v212, %v516
      %v518 = vpop.f32.mrb[0].mxu0
      %519 = vmatprep.mubr.f32.mxu0 0.0
      %520 = vmatmul.mubr.f32.gmra.mrb[0].mxu0 %v300
      %v521 = vpop.f32.mrb[0].mxu0
      %v522 = vadd.f32 %v212, %v521
      %v523 = vpop.f32.mrb[0].mxu0
      %524 = vmatprep.mubr.f32.mxu0 0.0
      %525 = vmatmul.mubr.f32.gmra.mrb[0].mxu0 %v303
      %v526 = vpop.f32.mrb[0].mxu0
      %v527 = vadd.f32 %v212, %v526
      %v528 = vpop.f32.mrb[0].mxu0
      %529 = vmatprep.mubr.f32.mxu0 0.0
      %530 = vmatmul.mubr.f32.gmra.mrb[0].mxu0 %v306
      %v531 = vpop.f32.mrb[0].mxu0
      %v532 = vadd.f32 %v212, %v531
      %v533 = vpop.f32.mrb[0].mxu0
      %534 = vmatprep.mubr.f32.mxu0 0.0
      %535 = vmatmul.mubr.f32.gmra.mrb[0].mxu0 %v309
      %v536 = vpop.f32.mrb[0].mxu0
      %v537 = vadd.f32 %v212, %v536
      %v538 = vpop.f32.mrb[0].mxu0
      %539 = vdwg.mxu0
      %v540 = vsub.f32 0.0, %v382
      %v541 = vsub.f32 0.0, %v387
      %v542 = vsub.f32 0.0, %v392
      %v543 = vsub.f32 0.0, %v397
      %v544 = vsub.f32 0.0, %v402
      %v545 = vsub.f32 0.0, %v407
      %v546 = vsub.f32 0.0, %v412
      %v547 = vsub.f32 0.0, %v417
      %v548 = vsub.f32 0.0, %v422
      %v549 = vsub.f32 0.0, %v427
      %v550 = vsub.f32 0.0, %v432
      %v551 = vsub.f32 0.0, %v437
      %v552 = vsub.f32 0.0, %v442
      %v553 = vsub.f32 0.0, %v447
      %v554 = vsub.f32 0.0, %v452
      %v555 = vsub.f32 0.0, %v457
      %v556 = vsub.f32 0.0, %v462
      %v557 = vsub.f32 0.0, %v467
      %v558 = vsub.f32 0.0, %v472
      %v559 = vsub.f32 0.0, %v477
      %v560 = vsub.f32 0.0, %v482
      %v561 = vsub.f32 0.0, %v487
      %v562 = vsub.f32 0.0, %v492
      %v563 = vsub.f32 0.0, %v497
      %v564 = vsub.f32 0.0, %v502
      %v565 = vsub.f32 0.0, %v507
      %v566 = vsub.f32 0.0, %v512
      %v567 = vsub.f32 0.0, %v517
      %v568 = vsub.f32 0.0, %v522
      %v569 = vsub.f32 0.0, %v527
      %v570 = vsub.f32 0.0, %v532
      %v571 = vsub.f32 0.0, %v537
      %v572 = vmul.f32 %v540, 1.442695
      %v573 = vpow.pop %v572
      %v574 = vmul.f32 %v541, 1.442695
      %v575 = vpow.pop %v574
      %v576 = vmul.f32 %v542, 1.442695
      %v577 = vpow.pop %v576
      %v578 = vmul.f32 %v543, 1.442695
      %v579 = vpow.pop %v578
      %v580 = vmul.f32 %v544, 1.442695
      %v581 = vpow.pop %v580
      %v582 = vmul.f32 %v545, 1.442695
      %v583 = vpow.pop %v582
      %v584 = vmul.f32 %v546, 1.442695
      %v585 = vpow.pop %v584
      %v586 = vmul.f32 %v547, 1.442695
      %v587 = vpow.pop %v586
      %v588 = vmul.f32 %v548, 1.442695
      %v589 = vpow.pop %v588
      %v590 = vmul.f32 %v549, 1.442695
      %v591 = vpow.pop %v590
      %v592 = vmul.f32 %v550, 1.442695
      %v593 = vpow.pop %v592
      %v594 = vmul.f32 %v551, 1.442695
      %v595 = vpow.pop %v594
      %v596 = vmul.f32 %v552, 1.442695
      %v597 = vpow.pop %v596
      %v598 = vmul.f32 %v553, 1.442695
      %v599 = vpow.pop %v598
      %v600 = vmul.f32 %v554, 1.442695
      %v601 = vpow.pop %v600
      %v602 = vmul.f32 %v555, 1.442695
      %v603 = vpow.pop %v602
      %v604 = vmul.f32 %v556, 1.442695
      %v605 = vpow.pop %v604
      %v606 = vmul.f32 %v557, 1.442695
      %v607 = vpow.pop %v606
      %v608 = vmul.f32 %v558, 1.442695
      %v609 = vpow.pop %v608
      %v610 = vmul.f32 %v559, 1.442695
      %v611 = vpow.pop %v610
      %v612 = vmul.f32 %v560, 1.442695
      %v613 = vpow.pop %v612
      %v614 = vmul.f32 %v561, 1.442695
      %v615 = vpow.pop %v614
      %v616 = vmul.f32 %v562, 1.442695
      %v617 = vpow.pop %v616
      %v618 = vmul.f32 %v563, 1.442695
      %v619 = vpow.pop %v618
      %v620 = vmul.f32 %v564, 1.442695
      %v621 = vpow.pop %v620
      %v622 = vmul.f32 %v565, 1.442695
      %v623 = vpow.pop %v622
      %v624 = vmul.f32 %v566, 1.442695
      %v625 = vpow.pop %v624
      %v626 = vmul.f32 %v567, 1.442695
      %v627 = vpow.pop %v626
      %v628 = vmul.f32 %v568, 1.442695
      %v629 = vpow.pop %v628
      %v630 = vmul.f32 %v569, 1.442695
      %v631 = vpow.pop %v630
      %v632 = vmul.f32 %v570, 1.442695
      %v633 = vpow.pop %v632
      %v634 = vmul.f32 %v571, 1.442695
      %v635 = vpow.pop %v634
      %v636 = vadd.f32 %v573, 1.0
      %v637 = vadd.f32 %v575, 1.0
      %v638 = vadd.f32 %v577, 1.0
      %v639 = vadd.f32 %v579, 1.0
      %v640 = vadd.f32 %v581, 1.0
      %v641 = vadd.f32 %v583, 1.0
      %v642 = vadd.f32 %v585, 1.0
      %v643 = vadd.f32 %v587, 1.0
      %v644 = vadd.f32 %v589, 1.0
      %v645 = vadd.f32 %v591, 1.0
      %v646 = vadd.f32 %v593, 1.0
      %v647 = vadd.f32 %v595, 1.0
      %v648 = vadd.f32 %v597, 1.0
      %v649 = vadd.f32 %v599, 1.0
      %v650 = vadd.f32 %v601, 1.0
      %v651 = vadd.f32 %v603, 1.0
      %v652 = vadd.f32 %v605, 1.0
      %v653 = vadd.f32 %v607, 1.0
      %v654 = vadd.f32 %v609, 1.0
      %v655 = vadd.f32 %v611, 1.0
      %v656 = vadd.f32 %v613, 1.0
      %v657 = vadd.f32 %v615, 1.0
      %v658 = vadd.f32 %v617, 1.0
      %v659 = vadd.f32 %v619, 1.0
      %v660 = vadd.f32 %v621, 1.0
      %v661 = vadd.f32 %v623, 1.0
      %v662 = vadd.f32 %v625, 1.0
      %v663 = vadd.f32 %v627, 1.0
      %v664 = vadd.f32 %v629, 1.0
      %v665 = vadd.f32 %v631, 1.0
      %v666 = vadd.f32 %v633, 1.0
      %v667 = vadd.f32 %v635, 1.0
      %v668 = vrcp.pop %v636
      %v669 = vrcp.pop %v637
      %v670 = vrcp.pop %v638
      %v671 = vrcp.pop %v639
      %v672 = vrcp.pop %v640
      %v673 = vrcp.pop %v641
      %v674 = vrcp.pop %v642
      %v675 = vrcp.pop %v643
      %v676 = vrcp.pop %v644
      %v677 = vrcp.pop %v645
      %v678 = vrcp.pop %v646
      %v679 = vrcp.pop %v647
      %v680 = vrcp.pop %v648
      %v681 = vrcp.pop %v649
      %v682 = vrcp.pop %v650
      %v683 = vrcp.pop %v651
      %v684 = vrcp.pop %v652
      %v685 = vrcp.pop %v653
      %v686 = vrcp.pop %v654
      %v687 = vrcp.pop %v655
      %v688 = vrcp.pop %v656
      %v689 = vrcp.pop %v657
      %v690 = vrcp.pop %v658
      %v691 = vrcp.pop %v659
      %v692 = vrcp.pop %v660
      %v693 = vrcp.pop %v661
      %v694 = vrcp.pop %v662
      %v695 = vrcp.pop %v663
      %v696 = vrcp.pop %v664
      %v697 = vrcp.pop %v665
      %v698 = vrcp.pop %v666
      %v699 = vrcp.pop %v667
      %v700 = vmul.f32 %v382, %v668
      %v701 = vmul.f32 %v387, %v669
      %v702 = vmul.f32 %v392, %v670
      %v703 = vmul.f32 %v397, %v671
      %v704 = vmul.f32 %v402, %v672
      %v705 = vmul.f32 %v407, %v673
      %v706 = vmul.f32 %v412, %v674
      %v707 = vmul.f32 %v417, %v675
      %v708 = vmul.f32 %v422, %v676
      %v709 = vmul.f32 %v427, %v677
      %v710 = vmul.f32 %v432, %v678
      %v711 = vmul.f32 %v437, %v679
      %v712 = vmul.f32 %v442, %v680
      %v713 = vmul.f32 %v447, %v681
      %v714 = vmul.f32 %v452, %v682
      %v715 = vmul.f32 %v457, %v683
      %v716 = vmul.f32 %v462, %v684
      %v717 = vmul.f32 %v467, %v685
      %v718 = vmul.f32 %v472, %v686
      %v719 = vmul.f32 %v477, %v687
      %v720 = vmul.f32 %v482, %v688
      %v721 = vmul.f32 %v487, %v689
      %v722 = vmul.f32 %v492, %v690
      %v723 = vmul.f32 %v497, %v691
      %v724 = vmul.f32 %v502, %v692
      %v725 = vmul.f32 %v507, %v693
      %v726 = vmul.f32 %v512, %v694
      %v727 = vmul.f32 %v517, %v695
      %v728 = vmul.f32 %v522, %v696
      %v729 = vmul.f32 %v527, %v697
      %v730 = vmul.f32 %v532, %v698
      %v731 = vmul.f32 %v537, %v699
      %732 = vst.msk [vmem:[%s172] sm:$0xff] %vm214, %v700
      %733 = vst.msk [vmem:[%s172 + $0x8] sm:$0xff] %vm214, %v701
      %734 = vst.msk [vmem:[%s172 + $0x10] sm:$0xff] %vm214, %v702
      %735 = vst.msk [vmem:[%s172 + $0x18] sm:$0xff] %vm214, %v703
      %736 = vst.msk [vmem:[%s172 + $0x20] sm:$0xff] %vm214, %v704
      %737 = vst.msk [vmem:[%s172 + $0x28] sm:$0xff] %vm214, %v705
      %738 = vst.msk [vmem:[%s172 + $0x30] sm:$0xff] %vm214, %v706
      %739 = vst.msk [vmem:[%s172 + $0x38] sm:$0xff] %vm214, %v707
      %740 = vst.msk [vmem:[%s172 + $0x40] sm:$0xff] %vm214, %v708
      %741 = vst.msk [vmem:[%s172 + $0x48] sm:$0xff] %vm214, %v709
      %742 = vst.msk [vmem:[%s172 + $0x50] sm:$0xff] %vm214, %v710
      %743 = vst.msk [vmem:[%s172 + $0x58] sm:$0xff] %vm214, %v711
      %744 = vst.msk [vmem:[%s172 + $0x60] sm:$0xff] %vm214, %v712
      %745 = vst.msk [vmem:[%s172 + $0x68] sm:$0xff] %vm214, %v713
      %746 = vst.msk [vmem:[%s172 + $0x70] sm:$0xff] %vm214, %v714
      %747 = vst.msk [vmem:[%s172 + $0x78] sm:$0xff] %vm214, %v715
      %748 = vst.msk [vmem:[%s172 + $0x80] sm:$0xff] %vm214, %v716
      %749 = vst.msk [vmem:[%s172 + $0x88] sm:$0xff] %vm214, %v717
      %750 = vst.msk [vmem:[%s172 + $0x90] sm:$0xff] %vm214, %v718
      %751 = vst.msk [vmem:[%s172 + $0x98] sm:$0xff] %vm214, %v719
      %752 = vst.msk [vmem:[%s172 + $0xa0] sm:$0xff] %vm214, %v720
      %753 = vst.msk [vmem:[%s172 + $0xa8] sm:$0xff] %vm214, %v721
      %754 = vst.msk [vmem:[%s172 + $0xb0] sm:$0xff] %vm214, %v722
      %755 = vst.msk [vmem:[%s172 + $0xb8] sm:$0xff] %vm214, %v723
      %756 = vst.msk [vmem:[%s172 + $0xc0] sm:$0xff] %vm214, %v724
      %757 = vst.msk [vmem:[%s172 + $0xc8] sm:$0xff] %vm214, %v725
      %758 = vst.msk [vmem:[%s172 + $0xd0] sm:$0xff] %vm214, %v726
      %759 = vst.msk [vmem:[%s172 + $0xd8] sm:$0xff] %vm214, %v727
      %760 = vst.msk [vmem:[%s172 + $0xe0] sm:$0xff] %vm214, %v728
      %761 = vst.msk [vmem:[%s172 + $0xe8] sm:$0xff] %vm214, %v729
      %762 = vst.msk [vmem:[%s172 + $0xf0] sm:$0xff] %vm214, %v730
      %763 = vst.msk [vmem:[%s172 + $0xf8] sm:$0xff] %vm214, %v731
      %s764 = smul.u32 32, %s14
      %p765 = scmp.lt.s32.totalorder %s764, 63
      %s766 = scalar_select %p765, %s764, 63
      %s767 = smul.addr %s766, 8
      %s768 = scalar_lea.vmem %s3, %s767
      // Predicated region
      $region33: #{residual_downsample.2} parent=31 // pred_check
        %p769 = pneg %p100
      $region34: #{residual_downsample.2} parent=31 // pred_check_branch
        %771 = sbr.rel (%p769) target = $region36
      $region35: #{residual_downsample.2} parent=31 // pred_region
        %s772 = smul.u32 32, %s14
      $region36: #{residual_downsample.2} parent=31 // pred_fallthru
        _
    $region32: #{residual_downsample.2} parent=5 // pred_fallthru
      _
    %p773 = scmp.le.s32.totalorder 2, %s9
    // Predicated region
    $region37: #{residual_downsample.2} parent=5 // pred_check
      %p774 = pneg %p773
    $region38: #{residual_downsample.2} parent=5 // pred_check_branch
      %776 = sbr.rel (%p774) target = $region40
    $region39: #{residual_downsample.2} parent=5 // pred_region
      %s777 = ssub.s32 %s9, 2
      // Predicated region
      $region41: #{residual_downsample.2} parent=39 // pred_check
        %p778 = pneg %p106
      $region42: #{residual_downsample.2} parent=39 // pred_check_branch
        %780 = sbr.rel (%p778) target = $region44
      $region43: #{residual_downsample.2} parent=39 // pred_region
        %s781 = smul.u32 32, %s15
        %p782 = scmp.lt.s32.totalorder %s781, 63
        %s783 = scalar_select %p782, %s781, 63
        %s784 = smul.addr %s783, 8
        %s785 = scalar_lea.vmem %s3, %s784
      $region44: #{residual_downsample.2} parent=39 // pred_fallthru
        _
    $region40: #{residual_downsample.2} parent=5 // pred_fallthru
      _
  $region6: #{residual_downsample.2} parent=0 // loop_footer
    %s13 = sadd.s32 1, %s9
  $region7: #{residual_downsample.2} parent=0 // loop_footer_branch
    %8 = sbr.rel target = $region3
  $region8: #{residual_downsample.2} parent=0 // loop_exit
    _

// kernel: residual_downsample.3
$region0: #{residual_downsample.3}
  #allocation0 [shape = 'u32[]', space=smem, size = 0x4, offset = 0x4, fixed_abs, tag = 'smem constant byte address 0x4 - core index']
  #allocation1 [shape = 'u32[144,128]{1,0:T(1,128)}', space=vmem, size = 0x12000, scoped, tag = 'internal scratch']
  %s0 = inlined_call_operand.vmem [shape: f32[2,36,9,4], index: 0, kind: input, shape index: {}]
  %s1 = inlined_call_operand.vmem [shape: f32[2,36,9,4], index: 1, kind: input, shape index: {}]
  %s2 = inlined_call_operand.vmem [shape: f32[9,1,4], index: 2, kind: input, shape index: {}]
  %s3 = inlined_call_operand.vmem [shape: f32[4,4], index: 3, kind: input, shape index: {}]
  %s4 = inlined_call_operand.vmem [shape: f32[1,4], index: 4, kind: input, shape index: {}]
  %s5 = inlined_call_operand.vmem [shape: f32[9,1,4], index: 5, kind: input, shape index: {}]
  %s6 = inlined_call_operand.vmem [shape: f32[4,4], index: 6, kind: input, shape index: {}]
  %s7 = inlined_call_operand.vmem [shape: f32[1,4], index: 7, kind: input, shape index: {}]
  %s8 = inlined_call_operand.vmem [shape: f32[2,64,4], index: 8, kind: output, shape index: {0}]
  %s9 = inlined_call_operand.vmem [shape: f32[2,64,4], index: 9, kind: output, shape index: {1}]
  %10 = xla_tuple %s8, %s9
  %s11 = sld [smem:[#allocation0]]
  $region73: #{residual_downsample.3} parent=0
    _
  %s13 = ssub.s32 1, %s11
  %s14 = scalar_select 0, %s13, %s11
  loop: start=0, step=1, limit=4
  $region2: #{residual_downsample.3} parent=0 // loop_pre_header
    _
  $region3: #{residual_downsample.3} parent=0 // loop_header
    %s16 = sphi 0, %s20
    %p17 = scmp.ge.s32.totalorder %s16, 4
    %s26 = sphi 0, %s28
    %s29 = sphi 0, %s26
    %s30 = sphi 0, %s29
    %s46 = sphi 0, %s30
    %s52 = sphi 0, %s54
    %s55 = sphi 0, %s52
    %s56 = sphi 0, %s55
    %s72 = sphi 0, %s56
    %s76 = sphi 0, %s76
    %s78 = sphi 0, %s76
    %s79 = sphi 0, %s78
    %s93 = sphi 0, %s79
    %s97 = sphi 0, %s97
    %s99 = sphi 0, %s97
    %s100 = sphi 0, %s99
    %s114 = sphi 0, %s100
    %s118 = sphi 0, %s118
    %s120 = sphi 0, %s118
    %s121 = sphi 0, %s120
    %s135 = sphi 0, %s121
    %s139 = sphi 0, %s139
    %s141 = sphi 0, %s139
    %s142 = sphi 0, %s141
    %s156 = sphi 0, %s142
    %s160 = sphi 0, %s160
    %s162 = sphi 0, %s160
    %s163 = sphi 0, %s162
    %s177 = sphi 0, %s163
    %s181 = sphi 0, %s181
    %s183 = sphi 0, %s181
    %s184 = sphi 0, %s183
    %s198 = sphi 0, %s184
    %s204 = sphi 0, %s206
    %s207 = sphi 0, %s204
    %s208 = sphi 0, %s207
    %s224 = sphi 0, %s208
    %s230 = sphi 0, %s232
    %s233 = sphi 0, %s230
    %s234 = sphi 0, %s233
    %s250 = sphi 0, %s234
  $region4: #{residual_downsample.3} parent=0 // loop_header_branch
    %19 = sbr.rel (%p17) target = $region8
  $region5: #{residual_downsample.3} parent=0 // loop_body
    %s21 = ssub.s32 %s16, 1
    %s22 = ssub.s32 %s16, 2
    %s23 = sadd.s32 %s16, 1
    %s24 = ssub.s32 %s16, %s23
    %p25 = scmp.eq.s32.totalorder %s24, 0
    %s27 = sadd.s32 %s26, 1
    %s28 = scalar_select %p25, %s26, %s27
    %p31 = pneg %p25
    %p32 = scmp.eq.s32.totalorder %s16, 1
    %p33 = por %p31, %p32
    %p34 = scmp.ne.s32.totalorder %s26, %s29
    %p35 = scmp.eq.s32.totalorder %s16, 0
    %p36 = por %p34, %p35
    %p37 = scmp.ne.s32.totalorder %s26, %s29
    %p38 = scmp.eq.s32.totalorder %s21, 1
    %p39 = por %p37, %p38
    %p40 = scmp.ne.s32.totalorder %s29, %s30
    %p41 = scmp.eq.s32.totalorder %s21, 0
    %p42 = por %p40, %p41
    %p43 = scmp.ne.s32.totalorder %s29, %s30
    %p44 = scmp.eq.s32.totalorder %s22, 1
    %p45 = por %p43, %p44
    %p47 = scmp.ne.s32.totalorder %s30, %s46
    %p48 = scmp.eq.s32.totalorder %s22, 0
    %p49 = por %p47, %p48
    %s50 = ssub.s32 %s16, %s23
    %p51 = scmp.eq.s32.totalorder %s50, 0
    %s53 = sadd.s32 %s52, 1
    %s54 = scalar_select %p51, %s52, %s53
    %p57 = pneg %p51
    %p58 = scmp.eq.s32.totalorder %s16, 1
    %p59 = por %p57, %p58
    %p60 = scmp.ne.s32.totalorder %s52, %s55
    %p61 = scmp.eq.s32.totalorder %s16, 0
    %p62 = por %p60, %p61
    %p63 = scmp.ne.s32.totalorder %s52, %s55
    %p64 = scmp.eq.s32.totalorder %s21, 1
    %p65 = por %p63, %p64
    %p66 = scmp.ne.s32.totalorder %s55, %s56
    %p67 = scmp.eq.s32.totalorder %s21, 0
    %p68 = por %p66, %p67
    %p69 = scmp.ne.s32.totalorder %s55, %s56
    %p70 = scmp.eq.s32.totalorder %s22, 1
    %p71 = por %p69, %p70
    %p73 = scmp.ne.s32.totalorder %s56, %s72
    %p74 = scmp.eq.s32.totalorder %s22, 0
    %p75 = por %p73, %p74
    %s77 = sadd.s32 %s76, 1
    %p80 = scmp.eq.s32.totalorder %s16, 1
    %p81 = scmp.ne.s32.totalorder %s76, %s78
    %p82 = scmp.eq.s32.totalorder %s16, 0
    %p83 = por %p81, %p82
    %p84 = scmp.ne.s32.totalorder %s76, %s78
    %p85 = scmp.eq.s32.totalorder %s21, 1
    %p86 = por %p84, %p85
    %p87 = scmp.ne.s32.totalorder %s78, %s79
    %p88 = scmp.eq.s32.totalorder %s21, 0
    %p89 = por %p87, %p88
    %p90 = scmp.ne.s32.totalorder %s78, %s79
    %p91 = scmp.eq.s32.totalorder %s22, 1
    %p92 = por %p90, %p91
    %p94 = scmp.ne.s32.totalorder %s79, %s93
    %p95 = scmp.eq.s32.totalorder %s22, 0
    %p96 = por %p94, %p95
    %s98 = sadd.s32 %s97, 1
    %p101 = scmp.eq.s32.totalorder %s16, 1
    %p102 = scmp.ne.s32.totalorder %s97, %s99
    %p103 = scmp.eq.s32.totalorder %s16, 0
    %p104 = por %p102, %p103
    %p105 = scmp.ne.s32.totalorder %s97, %s99
    %p106 = scmp.eq.s32.totalorder %s21, 1
    %p107 = por %p105, %p106
    %p108 = scmp.ne.s32.totalorder %s99, %s100
    %p109 = scmp.eq.s32.totalorder %s21, 0
    %p110 = por %p108, %p109
    %p111 = scmp.ne.s32.totalorder %s99, %s100
    %p112 = scmp.eq.s32.totalorder %s22, 1
    %p113 = por %p111, %p112
    %p115 = scmp.ne.s32.totalorder %s100, %s114
    %p116 = scmp.eq.s32.totalorder %s22, 0
    %p117 = por %p115, %p116
    %s119 = sadd.s32 %s118, 1
    %p122 = scmp.eq.s32.totalorder %s16, 1
    %p123 = scmp.ne.s32.totalorder %s118, %s120
    %p124 = scmp.eq.s32.totalorder %s16, 0
    %p125 = por %p123, %p124
    %p126 = scmp.ne.s32.totalorder %s118, %s120
    %p127 = scmp.eq.s32.totalorder %s21, 1
    %p128 = por %p126, %p127
    %p129 = scmp.ne.s32.totalorder %s120, %s121
    %p130 = scmp.eq.s32.totalorder %s21, 0
    %p131 = por %p129, %p130
    %p132 = scmp.ne.s32.totalorder %s120, %s121
    %p133 = scmp.eq.s32.totalorder %s22, 1
    %p134 = por %p132, %p133
    %p136 = scmp.ne.s32.totalorder %s121, %s135
    %p137 = scmp.eq.s32.totalorder %s22, 0
    %p138 = por %p136, %p137
    %s140 = sadd.s32 %s139, 1
    %p143 = scmp.eq.s32.totalorder %s16, 1
    %p144 = scmp.ne.s32.totalorder %s139, %s141
    %p145 = scmp.eq.s32.totalorder %s16, 0
    %p146 = por %p144, %p145
    %p147 = scmp.ne.s32.totalorder %s139, %s141
    %p148 = scmp.eq.s32.totalorder %s21, 1
    %p149 = por %p147, %p148
    %p150 = scmp.ne.s32.totalorder %s141, %s142
    %p151 = scmp.eq.s32.totalorder %s21, 0
    %p152 = por %p150, %p151
    %p153 = scmp.ne.s32.totalorder %s141, %s142
    %p154 = scmp.eq.s32.totalorder %s22, 1
    %p155 = por %p153, %p154
    %p157 = scmp.ne.s32.totalorder %s142, %s156
    %p158 = scmp.eq.s32.totalorder %s22, 0
    %p159 = por %p157, %p158
    %s161 = sadd.s32 %s160, 1
    %p164 = scmp.eq.s32.totalorder %s16, 1
    %p165 = scmp.ne.s32.totalorder %s160, %s162
    %p166 = scmp.eq.s32.totalorder %s16, 0
    %p167 = por %p165, %p166
    %p168 = scmp.ne.s32.totalorder %s160, %s162
    %p169 = scmp.eq.s32.totalorder %s21, 1
    %p170 = por %p168, %p169
    %p171 = scmp.ne.s32.totalorder %s162, %s163
    %p172 = scmp.eq.s32.totalorder %s21, 0
    %p173 = por %p171, %p172
    %p174 = scmp.ne.s32.totalorder %s162, %s163
    %p175 = scmp.eq.s32.totalorder %s22, 1
    %p176 = por %p174, %p175
    %p178 = scmp.ne.s32.totalorder %s163, %s177
    %p179 = scmp.eq.s32.totalorder %s22, 0
    %p180 = por %p178, %p179
    %s182 = sadd.s32 %s181, 1
    %p185 = scmp.eq.s32.totalorder %s16, 1
    %p186 = scmp.ne.s32.totalorder %s181, %s183
    %p187 = scmp.eq.s32.totalorder %s16, 0
    %p188 = por %p186, %p187
    %p189 = scmp.ne.s32.totalorder %s181, %s183
    %p190 = scmp.eq.s32.totalorder %s21, 1
    %p191 = por %p189, %p190
    %p192 = scmp.ne.s32.totalorder %s183, %s184
    %p193 = scmp.eq.s32.totalorder %s21, 0
    %p194 = por %p192, %p193
    %p195 = scmp.ne.s32.totalorder %s183, %s184
    %p196 = scmp.eq.s32.totalorder %s22, 1
    %p197 = por %p195, %p196
    %p199 = scmp.ne.s32.totalorder %s184, %s198
    %p200 = scmp.eq.s32.totalorder %s22, 0
    %p201 = por %p199, %p200
    %s202 = ssub.s32 %s16, %s23
    %p203 = scmp.eq.s32.totalorder %s202, 0
    %s205 = sadd.s32 %s204, 1
    %s206 = scalar_select %p203, %s204, %s205
    %p209 = pneg %p203
    %p210 = scmp.eq.s32.totalorder %s16, 1
    %p211 = por %p209, %p210
    %p212 = scmp.ne.s32.totalorder %s204, %s207
    %p213 = scmp.eq.s32.totalorder %s16, 0
    %p214 = por %p212, %p213
    %p215 = scmp.ne.s32.totalorder %s204, %s207
    %p216 = scmp.eq.s32.totalorder %s21, 1
    %p217 = por %p215, %p216
    %p218 = scmp.ne.s32.totalorder %s207, %s208
    %p219 = scmp.eq.s32.totalorder %s21, 0
    %p220 = por %p218, %p219
    %p221 = scmp.ne.s32.totalorder %s207, %s208
    %p222 = scmp.eq.s32.totalorder %s22, 1
    %p223 = por %p221, %p222
    %p225 = scmp.ne.s32.totalorder %s208, %s224
    %p226 = scmp.eq.s32.totalorder %s22, 0
    %p227 = por %p225, %p226
    %s228 = ssub.s32 %s16, %s23
    %p229 = scmp.eq.s32.totalorder %s228, 0
    %s231 = sadd.s32 %s230, 1
    %s232 = scalar_select %p229, %s230, %s231
    %p235 = pneg %p229
    %p236 = scmp.eq.s32.totalorder %s16, 1
    %p237 = por %p235, %p236
    %p238 = scmp.ne.s32.totalorder %s230, %s233
    %p239 = scmp.eq.s32.totalorder %s16, 0
    %p240 = por %p238, %p239
    %p241 = scmp.ne.s32.totalorder %s230, %s233
    %p242 = scmp.eq.s32.totalorder %s21, 1
    %p243 = por %p241, %p242
    %p244 = scmp.ne.s32.totalorder %s233, %s234
    %p245 = scmp.eq.s32.totalorder %s21, 0
    %p246 = por %p244, %p245
    %p247 = scmp.ne.s32.totalorder %s233, %s234
    %p248 = scmp.eq.s32.totalorder %s22, 1
    %p249 = por %p247, %p248
    %p251 = scmp.ne.s32.totalorder %s234, %s250
    %p252 = scmp.eq.s32.totalorder %s22, 0
    %p253 = por %p251, %p252
    %p254 = scmp.le.s32.totalorder 1, %s16
    %p255 = scmp.lt.s32.totalorder %s16, 3
    %p256 = pnand %p254, %p255
    %p257 = pneg %p256
    // Predicated region
    $region9: #{residual_downsample.3} parent=5 // pred_check
      _
    $region10: #{residual_downsample.3} parent=5 // pred_check_branch
      %259 = sbr.rel (%p256) target = $region12
    $region11: #{residual_downsample.3} parent=5 // pred_region
      %s260 = ssub.s32 %s16, 1
      // Predicated region
      $region13: #{residual_downsample.3} parent=11 // pred_check
        %p261 = pneg %p89
      $region14: #{residual_downsample.3} parent=11 // pred_check_branch
        %263 = sbr.rel (%p261) target = $region16
      $region15: #{residual_downsample.3} parent=11 // pred_region
        _
      $region16: #{residual_downsample.3} parent=11 // pred_fallthru
        _
      // Predicated region
      $region17: #{residual_downsample.3} parent=11 // pred_check
        %p264 = pneg %p110
      $region18: #{residual_downsample.3} parent=11 // pred_check_branch
        %266 = sbr.rel (%p264) target = $region20
      $region19: #{residual_downsample.3} parent=11 // pred_region
        _
      $region20: #{residual_downsample.3} parent=11 // pred_fallthru
        _
      // Predicated region
      $region21: #{residual_downsample.3} parent=11 // pred_check
        %p267 = pneg %p131
      $region22: #{residual_downsample.3} parent=11 // pred_check_branch
        %269 = sbr.rel (%p267) target = $region24
      $region23: #{residual_downsample.3} parent=11 // pred_region
        _
      $region24: #{residual_downsample.3} parent=11 // pred_fallthru
        _
      // Predicated region
      $region25: #{residual_downsample.3} parent=11 // pred_check
        %p270 = pneg %p152
      $region26: #{residual_downsample.3} parent=11 // pred_check_branch
        %272 = sbr.rel (%p270) target = $region28
      $region27: #{residual_downsample.3} parent=11 // pred_region
        _
      $region28: #{residual_downsample.3} parent=11 // pred_fallthru
        _
      // Predicated region
      $region29: #{residual_downsample.3} parent=11 // pred_check
        %p273 = pneg %p173
      $region30: #{residual_downsample.3} parent=11 // pred_check_branch
        %275 = sbr.rel (%p273) target = $region32
      $region31: #{residual_downsample.3} parent=11 // pred_region
        _
      $region32: #{residual_downsample.3} parent=11 // pred_fallthru
        _
      // Predicated region
      $region33: #{residual_downsample.3} parent=11 // pred_check
        %p276 = pneg %p194
      $region34: #{residual_downsample.3} parent=11 // pred_check_branch
        %278 = sbr.rel (%p276) target = $region36
      $region35: #{residual_downsample.3} parent=11 // pred_region
        _
      $region36: #{residual_downsample.3} parent=11 // pred_fallthru
        _
    $region12: #{residual_downsample.3} parent=5 // pred_fallthru
      _
    %p279 = scmp.lt.s32.totalorder %s16, 2
    // Predicated region
    $region37: #{residual_downsample.3} parent=5 // pred_check
      %p280 = pneg %p279
    $region38: #{residual_downsample.3} parent=5 // pred_check_branch
      %282 = sbr.rel (%p280) target = $region40
    $region39: #{residual_downsample.3} parent=5 // pred_region
      // Predicated region
      $region41: #{residual_downsample.3} parent=39 // pred_check
        %p283 = pneg %p36
      $region42: #{residual_downsample.3} parent=39 // pred_check_branch
        %285 = sbr.rel (%p283) target = $region44
      $region43: #{residual_downsample.3} parent=39 // pred_region
        %p286 = scmp.lt.s32.totalorder %s16, 1
        %s287 = scalar_select %p286, %s16, 1
        %s288 = smul.addr %s287, 72
        %s289 = smul.addr %s288, 8
        %s290 = scalar_lea.vmem %s0, %s289
      $region44: #{residual_downsample.3} parent=39 // pred_fallthru
        _
      // Predicated region
      $region45: #{residual_downsample.3} parent=39 // pred_check
        %p291 = pneg %p62
      $region46: #{residual_downsample.3} parent=39 // pred_check_branch
        %293 = sbr.rel (%p291) target = $region48
      $region47: #{residual_downsample.3} parent=39 // pred_region
        %p294 = scmp.lt.s32.totalorder %s16, 1
        %s295 = scalar_select %p294, %s16, 1
        %s296 = smul.addr %s295, 72
        %s297 = smul.addr %s296, 8
        %s298 = scalar_lea.vmem %s1, %s297
      $region48: #{residual_downsample.3} parent=39 // pred_fallthru
        _
    $region40: #{residual_downsample.3} parent=5 // pred_fallthru
      _
    %p299 = scmp.le.s32.totalorder 1, %s16
    %p300 = scmp.lt.s32.totalorder %s16, 3
    %p301 = pnand %p299, %p300
    %p302 = pneg %p301
    // Predicated region
    $region49: #{residual_downsample.3} parent=5 // pred_check
      _
    $region50: #{residual_downsample.3} parent=5 // pred_check_branch
      %304 = sbr.rel (%p301) target = $region52
    $region51: #{residual_downsample.3} parent=5 // pred_region
      %s305 = ssub.s32 %s16, 1
      %p306 = scmp.lt.s32.totalorder %s21, 1
      %s307 = scalar_select %p306, %s21, 1
      %s308 = smul.addr %s307, 72
      %s309 = smul.addr %s308, 8
      %s310 = scalar_lea.vmem %s0, %s309
      %p311 = pneg %p42
      %p312 = pneg %p39
      %p313 = scmp.lt.s32.totalorder %s21, 1
      %s314 = scalar_select %p313, %s21, 1
      %s315 = smul.addr %s314, 72
      %s316 = smul.addr %s315, 8
      %s317 = scalar_lea.vmem %s1, %s316
      %p318 = pneg %p68
      %p319 = pneg %p65
      %p320 = pneg %p89
      %p321 = pneg %p86
      %p322 = pneg %p110
      %p323 = pneg %p107
      %p324 = pneg %p131
      %p325 = pneg %p128
      %p326 = pneg %p152
      %p327 = pneg %p149
      %p328 = pneg %p173
      %p329 = pneg %p170
      %p330 = pneg %p194
      %p331 = pneg %p191
      %p332 = pneg %p220
      %p333 = pneg %p217
      %p334 = scmp.lt.s32.totalorder %s21, 1
      %s335 = scalar_select %p334, %s21, 1
      %s336 = smul.addr %s335, 8
      %s337 = smul.addr %s336, 8
      %s338 = scalar_lea.vmem %s8, %s337
      %p339 = pneg %p246
      %p340 = pneg %p243
      %p341 = scmp.lt.s32.totalorder %s21, 1
      %s342 = scalar_select %p341, %s21, 1
      %s343 = smul.addr %s342, 8
      %s344 = smul.addr %s343, 8
      %s345 = scalar_lea.vmem %s9, %s344
      %p346 = scmp.lt.s32.totalorder %s21, 1
      %s347 = scalar_select %p346, %s21, 1
      %s348 = smul.addr %s347, 72
      %s349 = smul.addr %s348, 8
      %s350 = scalar_lea.vmem %s0, %s349
      %p351 = scmp.lt.s32.totalorder %s21, 1
      %s352 = scalar_select %p351, %s21, 1
      %s353 = smul.addr %s352, 72
      %s354 = smul.addr %s353, 8
      %s355 = scalar_lea.vmem %s1, %s354
      %p356 = scmp.lt.s32.totalorder %s21, 1
      %s357 = scalar_select %p356, %s21, 1
      %s358 = smul.addr %s357, 8
      %s359 = smul.addr %s358, 8
      %s360 = scalar_lea.vmem %s8, %s359
      %p361 = scmp.lt.s32.totalorder %s21, 1
      %s362 = scalar_select %p361, %s21, 1
      %s363 = smul.addr %s362, 8
      %s364 = smul.addr %s363, 8
      %s365 = scalar_lea.vmem %s9, %s364
      %v366 = vld [vmem:[%s350] sm:$0xff]
      %v367 = vld [vmem:[%s350 + $0x10] sm:$0xff]
      %v368 = vld [vmem:[%s350 + $0x20] sm:$0xff]
      %v369 = vld [vmem:[%s350 + $0x30] sm:$0xff]
      %v370 = vld [vmem:[%s350 + $0x40] sm:$0xff]
      %v371 = vld [vmem:[%s350 + $0x50] sm:$0xff]
      %v372 = vld [vmem:[%s350 + $0x60] sm:$0xff]
      %v373 = vld [vmem:[%s350 + $0x70] sm:$0xff]
      %v374 = vld [vmem:[%s2] sm:$0x1]
      %v376 = vlaneseq
      %v377 = vshrl.u32 %v376, 7
      %v378 = vsub.s32 0, %v377
      %v379 = vrot.slane %v374, %v378
      %v381 = vmul.f32 %v366, %v379
      %v382 = vmul.f32 %v367, %v379
      %v383 = vmul.f32 %v368, %v379
      %v384 = vmul.f32 %v369, %v379
      %v385 = vmul.f32 %v370, %v379
      %v386 = vmul.f32 %v371, %v379
      %v387 = vmul.f32 %v372, %v379
      %v388 = vmul.f32 %v373, %v379
      %v389 = vadd.f32 %v381, 0.0
      %v390 = vadd.f32 %v382, 0.0
      %v391 = vadd.f32 %v383, 0.0
      %v392 = vadd.f32 %v384, 0.0
      %v393 = vadd.f32 %v385, 0.0
      %v394 = vadd.f32 %v386, 0.0
      %v395 = vadd.f32 %v387, 0.0
      %v396 = vadd.f32 %v388, 0.0
      %s397 = scalar_lea.vmem %s350, 144
      %v398 = vld [vmem:[%s397] sm:$0xff]
      %v399 = vld [vmem:[%s397 + $0x10] sm:$0xff]
      %v400 = vld [vmem:[%s397 + $0x20] sm:$0xff]
      %v401 = vld [vmem:[%s397 + $0x30] sm:$0xff]
      %v402 = vld [vmem:[%s397 + $0x40] sm:$0xff]
      %v403 = vld [vmem:[%s397 + $0x50] sm:$0xff]
      %v404 = vld [vmem:[%s397 + $0x60] sm:$0xff]
      %v405 = vld [vmem:[%s397 + $0x70] sm:$0xff]
      %s406 = scalar_lea.vmem %s2, 1
      %v407 = vld [vmem:[%s406] sm:$0x1]
      %v409 = vlaneseq
      %v410 = vshrl.u32 %v409, 7
      %v411 = vsub.s32 0, %v410
      %v412 = vrot.slane %v407, %v411
      %v414 = vmul.f32 %v398, %v412
      %v415 = vmul.f32 %v399, %v412
      %v416 = vmul.f32 %v400, %v412
      %v417 = vmul.f32 %v401, %v412
      %v418 = vmul.f32 %v402, %v412
      %v419 = vmul.f32 %v403, %v412
      %v420 = vmul.f32 %v404, %v412
      %v421 = vmul.f32 %v405, %v412
      %v422 = vadd.f32 %v389, %v414
      %v423 = vadd.f32 %v390, %v415
      %v424 = vadd.f32 %v391, %v416
      %v425 = vadd.f32 %v392, %v417
      %v426 = vadd.f32 %v393, %v418
      %v427 = vadd.f32 %v394, %v419
      %v428 = vadd.f32 %v395, %v420
      %v429 = vadd.f32 %v396, %v421
      %v430 = vld [vmem:[%s350 + $0x1] sm:$0xff]
      %v431 = vld [vmem:[%s350 + $0x11] sm:$0xff]
      %v432 = vld [vmem:[%s350 + $0x21] sm:$0xff]
      %v433 = vld [vmem:[%s350 + $0x31] sm:$0xff]
      %v434 = vld [vmem:[%s350 + $0x41] sm:$0xff]
      %v435 = vld [vmem:[%s350 + $0x51] sm:$0xff]
      %v436 = vld [vmem:[%s350 + $0x61] sm:$0xff]
      %v437 = vld [vmem:[%s350 + $0x71] sm:$0xff]
      %s438 = scalar_lea.vmem %s2, 2
      %v439 = vld [vmem:[%s438] sm:$0x1]
      %v441 = vlaneseq
      %v442 = vshrl.u32 %v441, 7
      %v443 = vsub.s32 0, %v442
      %v444 = vrot.slane %v439, %v443
      %v446 = vmul.f32 %v430, %v444
      %v447 = vmul.f32 %v431, %v444
      %v448 = vmul.f32 %v432, %v444
      %v449 = vmul.f32 %v433, %v444
      %v450 = vmul.f32 %v434, %v444
      %v451 = vmul.f32 %v435, %v444
      %v452 = vmul.f32 %v436, %v444
      %v453 = vmul.f32 %v437, %v444
      %v454 = vadd.f32 %v422, %v446
      %v455 = vadd.f32 %v423, %v447
      %v456 = vadd.f32 %v424, %v448
      %v457 = vadd.f32 %v425, %v449
      %v458 = vadd.f32 %v426, %v450
      %v459 = vadd.f32 %v427, %v451
      %v460 = vadd.f32 %v428, %v452
      %v461 = vadd.f32 %v429, %v453
      %s462 = scalar_lea.vmem %s350, 288
      %v463 = vld [vmem:[%s462] sm:$0xff]
      %v464 = vld [vmem:[%s462 + $0x10] sm:$0xff]
      %v465 = vld [vmem:[%s462 + $0x20] sm:$0xff]
      %v466 = vld [vmem:[%s462 + $0x30] sm:$0xff]
      %v467 = vld [vmem:[%s462 + $0x40] sm:$0xff]
      %v468 = vld [vmem:[%s462 + $0x50] sm:$0xff]
      %v469 = vld [vmem:[%s462 + $0x60] sm:$0xff]
      %v470 = vld [vmem:[%s462 + $0x70] sm:$0xff]
      %s471 = scalar_lea.vmem %s2, 3
      %v472 = vld [vmem:[%s471] sm:$0x1]
      %v474 = vlaneseq
      %v475 = vshrl.u32 %v474, 7
      %v476 = vsub.s32 0, %v475
      %v477 = vrot.slane %v472, %v476
      %v479 = vmul.f32 %v463, %v477
      %v480 = vmul.f32 %v464, %v477
      %v481 = vmul.f32 %v465, %v477
      %v482 = vmul.f32 %v466, %v477
      %v483 = vmul.f32 %v467, %v477
      %v484 = vmul.f32 %v468, %v477
      %v485 = vmul.f32 %v469, %v477
      %v486 = vmul.f32 %v470, %v477
      %v487 = vadd.f32 %v454, %v479
      %v488 = vadd.f32 %v455, %v480
      %v489 = vadd.f32 %v456, %v481
      %v490 = vadd.f32 %v457, %v482
      %v491 = vadd.f32 %v458, %v483
      %v492 = vadd.f32 %v459, %v484
      %v493 = vadd.f32 %v460, %v485
      %v494 = vadd.f32 %v461, %v486
      %s495 = scalar_lea.vmem %s350, 432
      %v496 = vld [vmem:[%s495] sm:$0xff]
      %v497 = vld [vmem:[%s495 + $0x10] sm:$0xff]
      %v498 = vld [vmem:[%s495 + $0x20] sm:$0xff]
      %v499 = vld [vmem:[%s495 + $0x30] sm:$0xff]
      %v500 = vld [vmem:[%s495 + $0x40] sm:$0xff]
      %v501 = vld [vmem:[%s495 + $0x50] sm:$0xff]
      %v502 = vld [vmem:[%s495 + $0x60] sm:$0xff]
      %v503 = vld [vmem:[%s495 + $0x70] sm:$0xff]
      %s504 = scalar_lea.vmem %s2, 4
      %v505 = vld [vmem:[%s504] sm:$0x1]
      %v507 = vlaneseq
      %v508 = vshrl.u32 %v507, 7
      %v509 = vsub.s32 0, %v508
      %v510 = vrot.slane %v505, %v509
      %v512 = vmul.f32 %v496, %v510
      %v513 = vmul.f32 %v497, %v510
      %v514 = vmul.f32 %v498, %v510
      %v515 = vmul.f32 %v499, %v510
      %v516 = vmul.f32 %v500, %v510
      %v517 = vmul.f32 %v501, %v510
      %v518 = vmul.f32 %v502, %v510
      %v519 = vmul.f32 %v503, %v510
      %v520 = vadd.f32 %v487, %v512
      %v521 = vadd.f32 %v488, %v513
      %v522 = vadd.f32 %v489, %v514
      %v523 = vadd.f32 %v490, %v515
      %v524 = vadd.f32 %v491, %v516
      %v525 = vadd.f32 %v492, %v517
      %v526 = vadd.f32 %v493, %v518
      %v527 = vadd.f32 %v494, %v519
      %v528 = vld [vmem:[%s462 + $0x1] sm:$0xff]
      %v529 = vld [vmem:[%s462 + $0x11] sm:$0xff]
      %v530 = vld [vmem:[%s462 + $0x21] sm:$0xff]
      %v531 = vld [vmem:[%s462 + $0x31] sm:$0xff]
      %v532 = vld [vmem:[%s462 + $0x41] sm:$0xff]
      %v533 = vld [vmem:[%s462 + $0x51] sm:$0xff]
      %v534 = vld [vmem:[%s462 + $0x61] sm:$0xff]
      %v535 = vld [vmem:[%s462 + $0x71] sm:$0xff]
      %s536 = scalar_lea.vmem %s2, 5
      %v537 = vld [vmem:[%s536] sm:$0x1]
      %v539 = vlaneseq
      %v540 = vshrl.u32 %v539, 7
      %v541 = vsub.s32 0, %v540
      %v542 = vrot.slane %v537, %v541
      %v544 = vmul.f32 %v528, %v542
      %v545 = vmul.f32 %v529, %v542
      %v546 = vmul.f32 %v530, %v542
      %v547 = vmul.f32 %v531, %v542
      %v548 = vmul.f32 %v532, %v542
      %v549 = vmul.f32 %v533, %v542
      %v550 = vmul.f32 %v534, %v542
      %v551 = vmul.f32 %v535, %v542
      %v552 = vadd.f32 %v520, %v544
      %v553 = vadd.f32 %v521, %v545
      %v554 = vadd.f32 %v522, %v546
      %v555 = vadd.f32 %v523, %v547
      %v556 = vadd.f32 %v524, %v548
      %v557 = vadd.f32 %v525, %v549
      %v558 = vadd.f32 %v526, %v550
      %v559 = vadd.f32 %v527, %v551
      %s560 = scalar_lea.vmem %s350, 16
      %v561 = vld [vmem:[%s560] sm:$0xff]
      %v562 = vld [vmem:[%s560 + $0x10] sm:$0xff]
      %v563 = vld [vmem:[%s560 + $0x20] sm:$0xff]
      %v564 = vld [vmem:[%s560 + $0x30] sm:$0xff]
      %v565 = vld [vmem:[%s560 + $0x40] sm:$0xff]
      %v566 = vld [vmem:[%s560 + $0x50] sm:$0xff]
      %v567 = vld [vmem:[%s560 + $0x60] sm:$0xff]
      %v568 = vld [vmem:[%s560 + $0x70] sm:$0xff]
      %s569 = scalar_lea.vmem %s2, 6
      %v570 = vld [vmem:[%s569] sm:$0x1]
      %v572 = vlaneseq
      %v573 = vshrl.u32 %v572, 7
      %v574 = vsub.s32 0, %v573
      %v575 = vrot.slane %v570, %v574
      %v577 = vmul.f32 %v561, %v575
      %v578 = vmul.f32 %v562, %v575
      %v579 = vmul.f32 %v563, %v575
      %v580 = vmul.f32 %v564, %v575
      %v581 = vmul.f32 %v565, %v575
      %v582 = vmul.f32 %v566, %v575
      %v583 = vmul.f32 %v567, %v575
      %v584 = vmul.f32 %v568, %v575
      %v585 = vadd.f32 %v552, %v577
      %v586 = vadd.f32 %v553, %v578
      %v587 = vadd.f32 %v554, %v579
      %v588 = vadd.f32 %v555, %v580
      %v589 = vadd.f32 %v556, %v581
      %v590 = vadd.f32 %v557, %v582
      %v591 = vadd.f32 %v558, %v583
      %v592 = vadd.f32 %v559, %v584
      %s593 = scalar_lea.vmem %s350, 160
      %v594 = vld [vmem:[%s593] sm:$0xff]
      %v595 = vld [vmem:[%s593 + $0x10] sm:$0xff]
      %v596 = vld [vmem:[%s593 + $0x20] sm:$0xff]
      %v597 = vld [vmem:[%s593 + $0x30] sm:$0xff]
      %v598 = vld [vmem:[%s593 + $0x40] sm:$0xff]
      %v599 = vld [vmem:[%s593 + $0x50] sm:$0xff]
      %v600 = vld [vmem:[%s593 + $0x60] sm:$0xff]
      %v601 = vld [vmem:[%s593 + $0x70] sm:$0xff]
      %s602 = scalar_lea.vmem %s2, 7
      %v603 = vld [vmem:[%s602] sm:$0x1]
      %v605 = vlaneseq
      %v606 = vshrl.u32 %v605, 7
      %v607 = vsub.s32 0, %v606
      %v608 = vrot.slane %v603, %v607
      %v610 = vmul.f32 %v594, %v608
      %v611 = vmul.f32 %v595, %v608
      %v612 = vmul.f32 %v596, %v608
      %v613 = vmul.f32 %v597, %v608
      %v614 = vmul.f32 %v598, %v608
      %v615 = vmul.f32 %v599, %v608
      %v616 = vmul.f32 %v600, %v608
      %v617 = vmul.f32 %v601, %v608
      %v618 = vadd.f32 %v585, %v610
      %v619 = vadd.f32 %v586, %v611
      %v620 = vadd.f32 %v587, %v612
      %v621 = vadd.f32 %v588, %v613
      %v622 = vadd.f32 %v589, %v614
      %v623 = vadd.f32 %v590, %v615
      %v624 = vadd.f32 %v591, %v616
      %v625 = vadd.f32 %v592, %v617
      %v626 = vld [vmem:[%s560 + $0x1] sm:$0xff]
      %v627 = vld [vmem:[%s560 + $0x11] sm:$0xff]
      %v628 = vld [vmem:[%s560 + $0x21] sm:$0xff]
      %v629 = vld [vmem:[%s560 + $0x31] sm:$0xff]
      %v630 = vld [vmem:[%s560 + $0x41] sm:$0xff]
      %v631 = vld [vmem:[%s560 + $0x51] sm:$0xff]
      %v632 = vld [vmem:[%s560 + $0x61] sm:$0xff]
      %v633 = vld [vmem:[%s560 + $0x71] sm:$0xff]
      %s634 = scalar_lea.vmem %s2, 8
      %v635 = vld [vmem:[%s634] sm:$0x1]
      %v637 = vlaneseq
      %v638 = vshrl.u32 %v637, 7
      %v639 = vsub.s32 0, %v638
      %v640 = vrot.slane %v635, %v639
      %v642 = vmul.f32 %v626, %v640
      %v643 = vmul.f32 %v627, %v640
      %v644 = vmul.f32 %v628, %v640
      %v645 = vmul.f32 %v629, %v640
      %v646 = vmul.f32 %v630, %v640
      %v647 = vmul.f32 %v631, %v640
      %v648 = vmul.f32 %v632, %v640
      %v649 = vmul.f32 %v633, %v640
      %v650 = vadd.f32 %v618, %v642
      %v651 = vadd.f32 %v619, %v643
      %v652 = vadd.f32 %v620, %v644
      %v653 = vadd.f32 %v621, %v645
      %v654 = vadd.f32 %v622, %v646
      %v655 = vadd.f32 %v623, %v647
      %v656 = vadd.f32 %v624, %v648
      %v657 = vadd.f32 %v625, %v649
      %v658 = vld [vmem:[%s3] sm:$0xf]
      %v659 = vld [vmem:[%s4] sm:$0x1]
      %v661 = vlaneseq
      %v662 = vshrl.u32 %v661, 7
      %v663 = vsub.s32 0, %v662
      %v664 = vrot.slane %v659, %v663
      %vm666 = vcmask 31744
      %v668 = vsel %vm666, %v650, 0
      %v671 = vsel %vm666, %v651, 0
      %v674 = vsel %vm666, %v652, 0
      %v677 = vsel %vm666, %v653, 0
      %v680 = vsel %vm666, %v654, 0
      %v683 = vsel %vm666, %v655, 0
      %v686 = vsel %vm666, %v656, 0
      %v689 = vsel %vm666, %v657, 0
      %vm691 = vcmask 1043456
      %v693 = vsel %vm691, %v658, 0
      %695 = vmatprep.subr.mxu0 0.0
      %696 = vmatpush1.msra.mxu0 %v693
      %697 = vmatprep.subr.mxu0 0.0
      %698 = vmatpush1.msra.mxu0 0.0
      %699 = vmatprep.subr.mxu0 0.0
      %700 = vmatpush1.msra.mxu0 0.0
      %701 = vmatprep.subr.mxu0 0.0
      %702 = vmatpush1.msra.mxu0 0.0
      %703 = vmatprep.subr.mxu0 0.0
      %704 = vmatpush1.msra.mxu0 0.0
      %705 = vmatprep.subr.mxu0 0.0
      %706 = vmatpush1.msra.mxu0 0.0
      %707 = vmatprep.subr.mxu0 0.0
      %708 = vmatpush1.msra.mxu0 0.0
      %709 = vmatprep.subr.mxu0 0.0
      %710 = vmatpush1.msra.mxu0 0.0
      %711 = vmatprep.subr.mxu0 0.0
      %712 = vmatpush1.msra.mxu0 0.0
      %713 = vmatprep.subr.mxu0 0.0
      %714 = vmatpush1.msra.mxu0 0.0
      %715 = vmatprep.subr.mxu0 0.0
      %716 = vmatpush1.msra.mxu0 0.0
      %717 = vmatprep.subr.mxu0 0.0
      %718 = vmatpush1.msra.mxu0 0.0
      %719 = vmatprep.subr.mxu0 0.0
      %720 = vmatpush1.msra.mxu0 0.0
      %721 = vmatprep.subr.mxu0 0.0
      %722 = vmatpush1.msra.mxu0 0.0
      %723 = vmatprep.subr.mxu0 0.0
      %724 = vmatpush1.msra.mxu0 0.0
      %725 = vmatprep.subr.mxu0 0.0
      %726 = vmatpush1.msra.mxu0 0.0
      %727 = vmatprep.subr.mxu0 0.0
      %728 = vmatpush1.msra.mxu0 0.0
      %729 = vmatprep.subr.mxu0 0.0
      %730 = vmatpush1.msra.mxu0 0.0
      %731 = vmatprep.subr.mxu0 0.0
      %732 = vmatpush1.msra.mxu0 0.0
      %733 = vmatprep.subr.mxu0 0.0
      %734 = vmatpush1.msra.mxu0 0.0
      %735 = vmatprep.subr.mxu0 0.0
      %736 = vmatpush1.msra.mxu0 0.0
      %737 = vmatprep.subr.mxu0 0.0
      %738 = vmatpush1.msra.mxu0 0.0
      %739 = vmatprep.subr.mxu0 0.0
      %740 = vmatpush1.msra.mxu0 0.0
      %741 = vmatprep.subr.mxu0 0.0
      %742 = vmatpush1.msra.mxu0 0.0
      %743 = vmatprep.subr.mxu0 0.0
      %744 = vmatpush1.msra.mxu0 0.0
      %745 = vmatprep.subr.mxu0 0.0
      %746 = vmatpush1.msra.mxu0 0.0
      %747 = vmatprep.subr.mxu0 0.0
      %748 = vmatpush1.msra.mxu0 0.0
      %749 = vmatprep.subr.mxu0 0.0
      %750 = vmatpush1.msra.mxu0 0.0
      %751 = vmatprep.subr.mxu0 0.0
      %752 = vmatpush1.msra.mxu0 0.0
      %753 = vmatprep.subr.mxu0 0.0
      %754 = vmatpush1.msra.mxu0 0.0
      %755 = vmatprep.subr.mxu0 0.0
      %756 = vmatpush1.msra.mxu0 0.0
      %757 = vmatprep.subr.mxu0 0.0
      %758 = vmatpush1.msra.mxu0 0.0
      %759 = vmatprep.mubr.f32.mxu0 0.0
      %760 = vmatmul.mubr.f32.gmra.mrb[0].mxu0 %v668
      %v761 = vpop.f32.mrb[0].mxu0
      %v762 = vadd.f32 %v664, %v761
      %v763 = vpop.f32.mrb[0].mxu0
      %764 = vmatprep.mubr.f32.mxu0 0.0
      %765 = vmatmul.mubr.f32.gmra.mrb[0].mxu0 %v671
      %v766 = vpop.f32.mrb[0].mxu0
      %v767 = vadd.f32 %v664, %v766
      %v768 = vpop.f32.mrb[0].mxu0
      %769 = vmatprep.mubr.f32.mxu0 0.0
      %770 = vmatmul.mubr.f32.gmra.mrb[0].mxu0 %v674
      %v771 = vpop.f32.mrb[0].mxu0
      %v772 = vadd.f32 %v664, %v771
      %v773 = vpop.f32.mrb[0].mxu0
      %774 = vmatprep.mubr.f32.mxu0 0.0
      %775 = vmatmul.mubr.f32.gmra.mrb[0].mxu0 %v677
      %v776 = vpop.f32.mrb[0].mxu0
      %v777 = vadd.f32 %v664, %v776
      %v778 = vpop.f32.mrb[0].mxu0
      %779 = vmatprep.mubr.f32.mxu0 0.0
      %780 = vmatmul.mubr.f32.gmra.mrb[0].mxu0 %v680
      %v781 = vpop.f32.mrb[0].mxu0
      %v782 = vadd.f32 %v664, %v781
      %v783 = vpop.f32.mrb[0].mxu0
      %784 = vmatprep.mubr.f32.mxu0 0.0
      %785 = vmatmul.mubr.f32.gmra.mrb[0].mxu0 %v683
      %v786 = vpop.f32.mrb[0].mxu0
      %v787 = vadd.f32 %v664, %v786
      %v788 = vpop.f32.mrb[0].mxu0
      %789 = vmatprep.mubr.f32.mxu0 0.0
      %790 = vmatmul.mubr.f32.gmra.mrb[0].mxu0 %v686
      %v791 = vpop.f32.mrb[0].mxu0
      %v792 = vadd.f32 %v664, %v791
      %v793 = vpop.f32.mrb[0].mxu0
      %794 = vmatprep.mubr.f32.mxu0 0.0
      %795 = vmatmul.mubr.f32.gmra.mrb[0].mxu0 %v689
      %v796 = vpop.f32.mrb[0].mxu0
      %v797 = vadd.f32 %v664, %v796
      %v798 = vpop.f32.mrb[0].mxu0
      %799 = vdwg.mxu0
      %v800 = vsub.f32 0.0, %v762
      %v801 = vsub.f32 0.0, %v767
      %v802 = vsub.f32 0.0, %v772
      %v803 = vsub.f32 0.0, %v777
      %v804 = vsub.f32 0.0, %v782
      %v805 = vsub.f32 0.0, %v787
      %v806 = vsub.f32 0.0, %v792
      %v807 = vsub.f32 0.0, %v797
      %v808 = vmul.f32 %v800, 1.442695
      %v809 = vpow.pop %v808
      %v810 = vmul.f32 %v801, 1.442695
      %v811 = vpow.pop %v810
      %v812 = vmul.f32 %v802, 1.442695
      %v813 = vpow.pop %v812
      %v814 = vmul.f32 %v803, 1.442695
      %v815 = vpow.pop %v814
      %v816 = vmul.f32 %v804, 1.442695
      %v817 = vpow.pop %v816
      %v818 = vmul.f32 %v805, 1.442695
      %v819 = vpow.pop %v818
      %v820 = vmul.f32 %v806, 1.442695
      %v821 = vpow.pop %v820
      %v822 = vmul.f32 %v807, 1.442695
      %v823 = vpow.pop %v822
      %v824 = vadd.f32 %v809, 1.0
      %v825 = vadd.f32 %v811, 1.0
      %v826 = vadd.f32 %v813, 1.0
      %v827 = vadd.f32 %v815, 1.0
      %v828 = vadd.f32 %v817, 1.0
      %v829 = vadd.f32 %v819, 1.0
      %v830 = vadd.f32 %v821, 1.0
      %v831 = vadd.f32 %v823, 1.0
      %v832 = vrcp.pop %v824
      %v833 = vrcp.pop %v825
      %v834 = vrcp.pop %v826
      %v835 = vrcp.pop %v827
      %v836 = vrcp.pop %v828
      %v837 = vrcp.pop %v829
      %v838 = vrcp.pop %v830
      %v839 = vrcp.pop %v831
      %v840 = vmul.f32 %v762, %v832
      %v841 = vmul.f32 %v767, %v833
      %v842 = vmul.f32 %v772, %v834
      %v843 = vmul.f32 %v777, %v835
      %v844 = vmul.f32 %v782, %v836
      %v845 = vmul.f32 %v787, %v837
      %v846 = vmul.f32 %v792, %v838
      %v847 = vmul.f32 %v797, %v839
      %848 = vst.msk [vmem:[%s360] sm:$0xff] %vm666, %v840
      %849 = vst.msk [vmem:[%s360 + $0x8] sm:$0xff] %vm666, %v841
      %850 = vst.msk [vmem:[%s360 + $0x10] sm:$0xff] %vm666, %v842
      %851 = vst.msk [vmem:[%s360 + $0x18] sm:$0xff] %vm666, %v843
      %852 = vst.msk [vmem:[%s360 + $0x20] sm:$0xff] %vm666, %v844
      %853 = vst.msk [vmem:[%s360 + $0x28] sm:$0xff] %vm666, %v845
      %854 = vst.msk [vmem:[%s360 + $0x30] sm:$0xff] %vm666, %v846
      %855 = vst.msk [vmem:[%s360 + $0x38] sm:$0xff] %vm666, %v847
      %v856 = vld [vmem:[%s355] sm:$0xff]
      %v857 = vld [vmem:[%s355 + $0x10] sm:$0xff]
      %v858 = vld [vmem:[%s355 + $0x20] sm:$0xff]
      %v859 = vld [vmem:[%s355 + $0x30] sm:$0xff]
      %v860 = vld [vmem:[%s355 + $0x40] sm:$0xff]
      %v861 = vld [vmem:[%s355 + $0x50] sm:$0xff]
      %v862 = vld [vmem:[%s355 + $0x60] sm:$0xff]
      %v863 = vld [vmem:[%s355 + $0x70] sm:$0xff]
      %v864 = vld [vmem:[%s5] sm:$0x1]
      %v866 = vlaneseq
      %v867 = vshrl.u32 %v866, 7
      %v868 = vsub.s32 0, %v867
      %v869 = vrot.slane %v864, %v868
      %v871 = vmul.f32 %v856, %v869
      %v872 = vmul.f32 %v857, %v869
      %v873 = vmul.f32 %v858, %v869
      %v874 = vmul.f32 %v859, %v869
      %v875 = vmul.f32 %v860, %v869
      %v876 = vmul.f32 %v861, %v869
      %v877 = vmul.f32 %v862, %v869
      %v878 = vmul.f32 %v863, %v869
      %v879 = vadd.f32 %v871, 0.0
      %v880 = vadd.f32 %v872, 0.0
      %v881 = vadd.f32 %v873, 0.0
      %v882 = vadd.f32 %v874, 0.0
      %v883 = vadd.f32 %v875, 0.0
      %v884 = vadd.f32 %v876, 0.0
      %v885 = vadd.f32 %v877, 0.0
      %v886 = vadd.f32 %v878, 0.0
      %s887 = scalar_lea.vmem %s355, 144
      %v888 = vld [vmem:[%s887] sm:$0xff]
      %v889 = vld [vmem:[%s887 + $0x10] sm:$0xff]
      %v890 = vld [vmem:[%s887 + $0x20] sm:$0xff]
      %v891 = vld [vmem:[%s887 + $0x30] sm:$0xff]
      %v892 = vld [vmem:[%s887 + $0x40] sm:$0xff]
      %v893 = vld [vmem:[%s887 + $0x50] sm:$0xff]
      %v894 = vld [vmem:[%s887 + $0x60] sm:$0xff]
      %v895 = vld [vmem:[%s887 + $0x70] sm:$0xff]
      %s896 = scalar_lea.vmem %s5, 1
      %v897 = vld [vmem:[%s896] sm:$0x1]
      %v899 = vlaneseq
      %v900 = vshrl.u32 %v899, 7
      %v901 = vsub.s32 0, %v900
      %v902 = vrot.slane %v897, %v901
      %v904 = vmul.f32 %v888, %v902
      %v905 = vmul.f32 %v889, %v902
      %v906 = vmul.f32 %v890, %v902
      %v907 = vmul.f32 %v891, %v902
      %v908 = vmul.f32 %v892, %v902
      %v909 = vmul.f32 %v893, %v902
      %v910 = vmul.f32 %v894, %v902
      %v911 = vmul.f32 %v895, %v902
      %v912 = vadd.f32 %v879, %v904
      %v913 = vadd.f32 %v880, %v905
      %v914 = vadd.f32 %v881, %v906
      %v915 = vadd.f32 %v882, %v907
      %v916 = vadd.f32 %v883, %v908
      %v917 = vadd.f32 %v884, %v909
      %v918 = vadd.f32 %v885, %v910
      %v919 = vadd.f32 %v886, %v911
      %v920 = vld [vmem:[%s355 + $0x1] sm:$0xff]
      %v921 = vld [vmem:[%s355 + $0x11] sm:$0xff]
      %v922 = vld [vmem:[%s355 + $0x21] sm:$0xff]
      %v923 = vld [vmem:[%s355 + $0x31] sm:$0xff]
      %v924 = vld [vmem:[%s355 + $0x41] sm:$0xff]
      %v925 = vld [vmem:[%s355 + $0x51] sm:$0xff]
      %v926 = vld [vmem:[%s355 + $0x61] sm:$0xff]
      %v927 = vld [vmem:[%s355 + $0x71] sm:$0xff]
      %s928 = scalar_lea.vmem %s5, 2
      %v929 = vld [vmem:[%s928] sm:$0x1]
      %v931 = vlaneseq
      %v932 = vshrl.u32 %v931, 7
      %v933 = vsub.s32 0, %v932
      %v934 = vrot.slane %v929, %v933
      %v936 = vmul.f32 %v920, %v934
      %v937 = vmul.f32 %v921, %v934
      %v938 = vmul.f32 %v922, %v934
      %v939 = vmul.f32 %v923, %v934
      %v940 = vmul.f32 %v924, %v934
      %v941 = vmul.f32 %v925, %v934
      %v942 = vmul.f32 %v926, %v934
      %v943 = vmul.f32 %v927, %v934
      %v944 = vadd.f32 %v912, %v936
      %v945 = vadd.f32 %v913, %v937
      %v946 = vadd.f32 %v914, %v938
      %v947 = vadd.f32 %v915, %v939
      %v948 = vadd.f32 %v916, %v940
      %v949 = vadd.f32 %v917, %v941
      %v950 = vadd.f32 %v918, %v942
      %v951 = vadd.f32 %v919, %v943
      %s952 = scalar_lea.vmem %s355, 288
      %v953 = vld [vmem:[%s952] sm:$0xff]
      %v954 = vld [vmem:[%s952 + $0x10] sm:$0xff]
      %v955 = vld [vmem:[%s952 + $0x20] sm:$0xff]
      %v956 = vld [vmem:[%s952 + $0x30] sm:$0xff]
      %v957 = vld [vmem:[%s952 + $0x40] sm:$0xff]
      %v958 = vld [vmem:[%s952 + $0x50] sm:$0xff]
      %v959 = vld [vmem:[%s952 + $0x60] sm:$0xff]
      %v960 = vld [vmem:[%s952 + $0x70] sm:$0xff]
      %s961 = scalar_lea.vmem %s5, 3
      %v962 = vld [vmem:[%s961] sm:$0x1]
      %v964 = vlaneseq
      %v965 = vshrl.u32 %v964, 7
      %v966 = vsub.s32 0, %v965
      %v967 = vrot.slane %v962, %v966
      %v969 = vmul.f32 %v953, %v967
      %v970 = vmul.f32 %v954, %v967
      %v971 = vmul.f32 %v955, %v967
      %v972 = vmul.f32 %v956, %v967
      %v973 = vmul.f32 %v957, %v967
      %v974 = vmul.f32 %v958, %v967
      %v975 = vmul.f32 %v959, %v967
      %v976 = vmul.f32 %v960, %v967
      %v977 = vadd.f32 %v944, %v969
      %v978 = vadd.f32 %v945, %v970
      %v979 = vadd.f32 %v946, %v971
      %v980 = vadd.f32 %v947, %v972
      %v981 = vadd.f32 %v948, %v973
      %v982 = vadd.f32 %v949, %v974
      %v983 = vadd.f32 %v950, %v975
      %v984 = vadd.f32 %v951, %v976
      %s985 = scalar_lea.vmem %s355, 432
      %v986 = vld [vmem:[%s985] sm:$0xff]
      %v987 = vld [vmem:[%s985 + $0x10] sm:$0xff]
      %v988 = vld [vmem:[%s985 + $0x20] sm:$0xff]
      %v989 = vld [vmem:[%s985 + $0x30] sm:$0xff]
      %v990 = vld [vmem:[%s985 + $0x40] sm:$0xff]
      %v991 = vld [vmem:[%s985 + $0x50] sm:$0xff]
      %v992 = vld [vmem:[%s985 + $0x60] sm:$0xff]
      %v993 = vld [vmem:[%s985 + $0x70] sm:$0xff]
      %s994 = scalar_lea.vmem %s5, 4
      %v995 = vld [vmem:[%s994] sm:$0x1]
      %v997 = vlaneseq
      %v998 = vshrl.u32 %v997, 7
      %v999 = vsub.s32 0, %v998
      %v1000 = vrot.slane %v995, %v999
      %v1002 = vmul.f32 %v986, %v1000
      %v1003 = vmul.f32 %v987, %v1000
      %v1004 = vmul.f32 %v988, %v1000
      %v1005 = vmul.f32 %v989, %v1000
      %v1006 = vmul.f32 %v990, %v1000
      %v1007 = vmul.f32 %v991, %v1000
      %v1008 = vmul.f32 %v992, %v1000
      %v1009 = vmul.f32 %v993, %v1000
      %v1010 = vadd.f32 %v977, %v1002
      %v1011 = vadd.f32 %v978, %v1003
      %v1012 = vadd.f32 %v979, %v1004
      %v1013 = vadd.f32 %v980, %v1005
      %v1014 = vadd.f32 %v981, %v1006
      %v1015 = vadd.f32 %v982, %v1007
      %v1016 = vadd.f32 %v983, %v1008
      %v1017 = vadd.f32 %v984, %v1009
      %v1018 = vld [vmem:[%s952 + $0x1] sm:$0xff]
      %v1019 = vld [vmem:[%s952 + $0x11] sm:$0xff]
      %v1020 = vld [vmem:[%s952 + $0x21] sm:$0xff]
      %v1021 = vld [vmem:[%s952 + $0x31] sm:$0xff]
      %v1022 = vld [vmem:[%s952 + $0x41] sm:$0xff]
      %v1023 = vld [vmem:[%s952 + $0x51] sm:$0xff]
      %v1024 = vld [vmem:[%s952 + $0x61] sm:$0xff]
      %v1025 = vld [vmem:[%s952 + $0x71] sm:$0xff]
      %s1026 = scalar_lea.vmem %s5, 5
      %v1027 = vld [vmem:[%s1026] sm:$0x1]
      %v1029 = vlaneseq
      %v1030 = vshrl.u32 %v1029, 7
      %v1031 = vsub.s32 0, %v1030
      %v1032 = vrot.slane %v1027, %v1031
      %v1034 = vmul.f32 %v1018, %v1032
      %v1035 = vmul.f32 %v1019, %v1032
      %v1036 = vmul.f32 %v1020, %v1032
      %v1037 = vmul.f32 %v1021, %v1032
      %v1038 = vmul.f32 %v1022, %v1032
      %v1039 = vmul.f32 %v1023, %v1032
      %v1040 = vmul.f32 %v1024, %v1032
      %v1041 = vmul.f32 %v1025, %v1032
      %v1042 = vadd.f32 %v1010, %v1034
      %v1043 = vadd.f32 %v1011, %v1035
      %v1044 = vadd.f32 %v1012, %v1036
      %v1045 = vadd.f32 %v1013, %v1037
      %v1046 = vadd.f32 %v1014, %v1038
      %v1047 = vadd.f32 %v1015, %v1039
      %v1048 = vadd.f32 %v1016, %v1040
      %v1049 = vadd.f32 %v1017, %v1041
      %s1050 = scalar_lea.vmem %s355, 16
      %v1051 = vld [vmem:[%s1050] sm:$0xff]
      %v1052 = vld [vmem:[%s1050 + $0x10] sm:$0xff]
      %v1053 = vld [vmem:[%s1050 + $0x20] sm:$0xff]
      %v1054 = vld [vmem:[%s1050 + $0x30] sm:$0xff]
      %v1055 = vld [vmem:[%s1050 + $0x40] sm:$0xff]
      %v1056 = vld [vmem:[%s1050 + $0x50] sm:$0xff]
      %v1057 = vld [vmem:[%s1050 + $0x60] sm:$0xff]
      %v1058 = vld [vmem:[%s1050 + $0x70] sm:$0xff]
      %s1059 = scalar_lea.vmem %s5, 6
      %v1060 = vld [vmem:[%s1059] sm:$0x1]
      %v1062 = vlaneseq
      %v1063 = vshrl.u32 %v1062, 7
      %v1064 = vsub.s32 0, %v1063
      %v1065 = vrot.slane %v1060, %v1064
      %v1067 = vmul.f32 %v1051, %v1065
      %v1068 = vmul.f32 %v1052, %v1065
      %v1069 = vmul.f32 %v1053, %v1065
      %v1070 = vmul.f32 %v1054, %v1065
      %v1071 = vmul.f32 %v1055, %v1065
      %v1072 = vmul.f32 %v1056, %v1065
      %v1073 = vmul.f32 %v1057, %v1065
      %v1074 = vmul.f32 %v1058, %v1065
      %v1075 = vadd.f32 %v1042, %v1067
      %v1076 = vadd.f32 %v1043, %v1068
      %v1077 = vadd.f32 %v1044, %v1069
      %v1078 = vadd.f32 %v1045, %v1070
      %v1079 = vadd.f32 %v1046, %v1071
      %v1080 = vadd.f32 %v1047, %v1072
      %v1081 = vadd.f32 %v1048, %v1073
      %v1082 = vadd.f32 %v1049, %v1074
      %s1083 = scalar_lea.vmem %s355, 160
      %v1084 = vld [vmem:[%s1083] sm:$0xff]
      %v1085 = vld [vmem:[%s1083 + $0x10] sm:$0xff]
      %v1086 = vld [vmem:[%s1083 + $0x20] sm:$0xff]
      %v1087 = vld [vmem:[%s1083 + $0x30] sm:$0xff]
      %v1088 = vld [vmem:[%s1083 + $0x40] sm:$0xff]
      %v1089 = vld [vmem:[%s1083 + $0x50] sm:$0xff]
      %v1090 = vld [vmem:[%s1083 + $0x60] sm:$0xff]
      %v1091 = vld [vmem:[%s1083 + $0x70] sm:$0xff]
      %s1092 = scalar_lea.vmem %s5, 7
      %v1093 = vld [vmem:[%s1092] sm:$0x1]
      %v1095 = vlaneseq
      %v1096 = vshrl.u32 %v1095, 7
      %v1097 = vsub.s32 0, %v1096
      %v1098 = vrot.slane %v1093, %v1097
      %v1100 = vmul.f32 %v1084, %v1098
      %v1101 = vmul.f32 %v1085, %v1098
      %v1102 = vmul.f32 %v1086, %v1098
      %v1103 = vmul.f32 %v1087, %v1098
      %v1104 = vmul.f32 %v1088, %v1098
      %v1105 = vmul.f32 %v1089, %v1098
      %v1106 = vmul.f32 %v1090, %v1098
      %v1107 = vmul.f32 %v1091, %v1098
      %v1108 = vadd.f32 %v1075, %v1100
      %v1109 = vadd.f32 %v1076, %v1101
      %v1110 = vadd.f32 %v1077, %v1102
      %v1111 = vadd.f32 %v1078, %v1103
      %v1112 = vadd.f32 %v1079, %v1104
      %v1113 = vadd.f32 %v1080, %v1105
      %v1114 = vadd.f32 %v1081, %v1106
      %v1115 = vadd.f32 %v1082, %v1107
      %v1116 = vld [vmem:[%s1050 + $0x1] sm:$0xff]
      %v1117 = vld [vmem:[%s1050 + $0x11] sm:$0xff]
      %v1118 = vld [vmem:[%s1050 + $0x21] sm:$0xff]
      %v1119 = vld [vmem:[%s1050 + $0x31] sm:$0xff]
      %v1120 = vld [vmem:[%s1050 + $0x41] sm:$0xff]
      %v1121 = vld [vmem:[%s1050 + $0x51] sm:$0xff]
      %v1122 = vld [vmem:[%s1050 + $0x61] sm:$0xff]
      %v1123 = vld [vmem:[%s1050 + $0x71] sm:$0xff]
      %s1124 = scalar_lea.vmem %s5, 8
      %v1125 = vld [vmem:[%s1124] sm:$0x1]
      %v1127 = vlaneseq
      %v1128 = vshrl.u32 %v1127, 7
      %v1129 = vsub.s32 0, %v1128
      %v1130 = vrot.slane %v1125, %v1129
      %v1132 = vmul.f32 %v1116, %v1130
      %v1133 = vmul.f32 %v1117, %v1130
      %v1134 = vmul.f32 %v1118, %v1130
      %v1135 = vmul.f32 %v1119, %v1130
      %v1136 = vmul.f32 %v1120, %v1130
      %v1137 = vmul.f32 %v1121, %v1130
      %v1138 = vmul.f32 %v1122, %v1130
      %v1139 = vmul.f32 %v1123, %v1130
      %v1140 = vadd.f32 %v1108, %v1132
      %v1141 = vadd.f32 %v1109, %v1133
      %v1142 = vadd.f32 %v1110, %v1134
      %v1143 = vadd.f32 %v1111, %v1135
      %v1144 = vadd.f32 %v1112, %v1136
      %v1145 = vadd.f32 %v1113, %v1137
      %v1146 = vadd.f32 %v1114, %v1138
      %v1147 = vadd.f32 %v1115, %v1139
      %v1148 = vld [vmem:[%s6] sm:$0xf]
      %v1149 = vld [vmem:[%s7] sm:$0x1]
      %v1151 = vlaneseq
      %v1152 = vshrl.u32 %v1151, 7
      %v1153 = vsub.s32 0, %v1152
      %v1154 = vrot.slane %v1149, %v1153
      %v1157 = vsel %vm666, %v1140, 0
      %v1160 = vsel %vm666, %v1141, 0
      %v1163 = vsel %vm666, %v1142, 0
      %v1166 = vsel %vm666, %v1143, 0
      %v1169 = vsel %vm666, %v1144, 0
      %v1172 = vsel %vm666, %v1145, 0
      %v1175 = vsel %vm666, %v1146, 0
      %v1178 = vsel %vm666, %v1147, 0
      %v1181 = vsel %vm691, %v1148, 0
      %1183 = vmatprep.subr.mxu0 0.0
      %1184 = vmatpush1.msra.mxu0 %v1181
      %1185 = vmatprep.subr.mxu0 0.0
      %1186 = vmatpush1.msra.mxu0 0.0
      %1187 = vmatprep.subr.mxu0 0.0
      %1188 = vmatpush1.msra.mxu0 0.0
      %1189 = vmatprep.subr.mxu0 0.0
      %1190 = vmatpush1.msra.mxu0 0.0
      %1191 = vmatprep.subr.mxu0 0.0
      %1192 = vmatpush1.msra.mxu0 0.0
      %1193 = vmatprep.subr.mxu0 0.0
      %1194 = vmatpush1.msra.mxu0 0.0
      %1195 = vmatprep.subr.mxu0 0.0
      %1196 = vmatpush1.msra.mxu0 0.0
      %1197 = vmatprep.subr.mxu0 0.0
      %1198 = vmatpush1.msra.mxu0 0.0
      %1199 = vmatprep.subr.mxu0 0.0
      %1200 = vmatpush1.msra.mxu0 0.0
      %1201 = vmatprep.subr.mxu0 0.0
      %1202 = vmatpush1.msra.mxu0 0.0
      %1203 = vmatprep.subr.mxu0 0.0
      %1204 = vmatpush1.msra.mxu0 0.0
      %1205 = vmatprep.subr.mxu0 0.0
      %1206 = vmatpush1.msra.mxu0 0.0
      %1207 = vmatprep.subr.mxu0 0.0
      %1208 = vmatpush1.msra.mxu0 0.0
      %1209 = vmatprep.subr.mxu0 0.0
      %1210 = vmatpush1.msra.mxu0 0.0
      %1211 = vmatprep.subr.mxu0 0.0
      %1212 = vmatpush1.msra.mxu0 0.0
      %1213 = vmatprep.subr.mxu0 0.0
      %1214 = vmatpush1.msra.mxu0 0.0
      %1215 = vmatprep.subr.mxu0 0.0
      %1216 = vmatpush1.msra.mxu0 0.0
      %1217 = vmatprep.subr.mxu0 0.0
      %1218 = vmatpush1.msra.mxu0 0.0
      %1219 = vmatprep.subr.mxu0 0.0
      %1220 = vmatpush1.msra.mxu0 0.0
      %1221 = vmatprep.subr.mxu0 0.0
      %1222 = vmatpush1.msra.mxu0 0.0
      %1223 = vmatprep.subr.mxu0 0.0
      %1224 = vmatpush1.msra.mxu0 0.0
      %1225 = vmatprep.subr.mxu0 0.0
      %1226 = vmatpush1.msra.mxu0 0.0
      %1227 = vmatprep.subr.mxu0 0.0
      %1228 = vmatpush1.msra.mxu0 0.0
      %1229 = vmatprep.subr.mxu0 0.0
      %1230 = vmatpush1.msra.mxu0 0.0
      %1231 = vmatprep.subr.mxu0 0.0
      %1232 = vmatpush1.msra.mxu0 0.0
      %1233 = vmatprep.subr.mxu0 0.0
      %1234 = vmatpush1.msra.mxu0 0.0
      %1235 = vmatprep.subr.mxu0 0.0
      %1236 = vmatpush1.msra.mxu0 0.0
      %1237 = vmatprep.subr.mxu0 0.0
      %1238 = vmatpush1.msra.mxu0 0.0
      %1239 = vmatprep.subr.mxu0 0.0
      %1240 = vmatpush1.msra.mxu0 0.0
      %1241 = vmatprep.subr.mxu0 0.0
      %1242 = vmatpush1.msra.mxu0 0.0
      %1243 = vmatprep.subr.mxu0 0.0
      %1244 = vmatpush1.msra.mxu0 0.0
      %1245 = vmatprep.subr.mxu0 0.0
      %1246 = vmatpush1.msra.mxu0 0.0
      %1247 = vmatprep.mubr.f32.mxu0 0.0
      %1248 = vmatmul.mubr.f32.gmra.mrb[0].mxu0 %v1157
      %v1249 = vpop.f32.mrb[0].mxu0
      %v1250 = vadd.f32 %v1154, %v1249
      %v1251 = vpop.f32.mrb[0].mxu0
      %1252 = vmatprep.mubr.f32.mxu0 0.0
      %1253 = vmatmul.mubr.f32.gmra.mrb[0].mxu0 %v1160
      %v1254 = vpop.f32.mrb[0].mxu0
      %v1255 = vadd.f32 %v1154, %v1254
      %v1256 = vpop.f32.mrb[0].mxu0
      %1257 = vmatprep.mubr.f32.mxu0 0.0
      %1258 = vmatmul.mubr.f32.gmra.mrb[0].mxu0 %v1163
      %v1259 = vpop.f32.mrb[0].mxu0
      %v1260 = vadd.f32 %v1154, %v1259
      %v1261 = vpop.f32.mrb[0].mxu0
      %1262 = vmatprep.mubr.f32.mxu0 0.0
      %1263 = vmatmul.mubr.f32.gmra.mrb[0].mxu0 %v1166
      %v1264 = vpop.f32.mrb[0].mxu0
      %v1265 = vadd.f32 %v1154, %v1264
      %v1266 = vpop.f32.mrb[0].mxu0
      %1267 = vmatprep.mubr.f32.mxu0 0.0
      %1268 = vmatmul.mubr.f32.gmra.mrb[0].mxu0 %v1169
      %v1269 = vpop.f32.mrb[0].mxu0
      %v1270 = vadd.f32 %v1154, %v1269
      %v1271 = vpop.f32.mrb[0].mxu0
      %1272 = vmatprep.mubr.f32.mxu0 0.0
      %1273 = vmatmul.mubr.f32.gmra.mrb[0].mxu0 %v1172
      %v1274 = vpop.f32.mrb[0].mxu0
      %v1275 = vadd.f32 %v1154, %v1274
      %v1276 = vpop.f32.mrb[0].mxu0
      %1277 = vmatprep.mubr.f32.mxu0 0.0
      %1278 = vmatmul.mubr.f32.gmra.mrb[0].mxu0 %v1175
      %v1279 = vpop.f32.mrb[0].mxu0
      %v1280 = vadd.f32 %v1154, %v1279
      %v1281 = vpop.f32.mrb[0].mxu0
      %1282 = vmatprep.mubr.f32.mxu0 0.0
      %1283 = vmatmul.mubr.f32.gmra.mrb[0].mxu0 %v1178
      %v1284 = vpop.f32.mrb[0].mxu0
      %v1285 = vadd.f32 %v1154, %v1284
      %v1286 = vpop.f32.mrb[0].mxu0
      %1287 = vdwg.mxu0
      %v1288 = vsub.f32 0.0, %v1250
      %v1289 = vsub.f32 0.0, %v1255
      %v1290 = vsub.f32 0.0, %v1260
      %v1291 = vsub.f32 0.0, %v1265
      %v1292 = vsub.f32 0.0, %v1270
      %v1293 = vsub.f32 0.0, %v1275
      %v1294 = vsub.f32 0.0, %v1280
      %v1295 = vsub.f32 0.0, %v1285
      %v1296 = vmul.f32 %v1288, 1.442695
      %v1297 = vpow.pop %v1296
      %v1298 = vmul.f32 %v1289, 1.442695
      %v1299 = vpow.pop %v1298
      %v1300 = vmul.f32 %v1290, 1.442695
      %v1301 = vpow.pop %v1300
      %v1302 = vmul.f32 %v1291, 1.442695
      %v1303 = vpow.pop %v1302
      %v1304 = vmul.f32 %v1292, 1.442695
      %v1305 = vpow.pop %v1304
      %v1306 = vmul.f32 %v1293, 1.442695
      %v1307 = vpow.pop %v1306
      %v1308 = vmul.f32 %v1294, 1.442695
      %v1309 = vpow.pop %v1308
      %v1310 = vmul.f32 %v1295, 1.442695
      %v1311 = vpow.pop %v1310
      %v1312 = vadd.f32 %v1297, 1.0
      %v1313 = vadd.f32 %v1299, 1.0
      %v1314 = vadd.f32 %v1301, 1.0
      %v1315 = vadd.f32 %v1303, 1.0
      %v1316 = vadd.f32 %v1305, 1.0
      %v1317 = vadd.f32 %v1307, 1.0
      %v1318 = vadd.f32 %v1309, 1.0
      %v1319 = vadd.f32 %v1311, 1.0
      %v1320 = vrcp.pop %v1312
      %v1321 = vrcp.pop %v1313
      %v1322 = vrcp.pop %v1314
      %v1323 = vrcp.pop %v1315
      %v1324 = vrcp.pop %v1316
      %v1325 = vrcp.pop %v1317
      %v1326 = vrcp.pop %v1318
      %v1327 = vrcp.pop %v1319
      %v1328 = vmul.f32 %v1250, %v1320
      %v1329 = vmul.f32 %v1255, %v1321
      %v1330 = vmul.f32 %v1260, %v1322
      %v1331 = vmul.f32 %v1265, %v1323
      %v1332 = vmul.f32 %v1270, %v1324
      %v1333 = vmul.f32 %v1275, %v1325
      %v1334 = vmul.f32 %v1280, %v1326
      %v1335 = vmul.f32 %v1285, %v1327
      %1336 = vst.msk [vmem:[%s365] sm:$0xff] %vm666, %v1328
      %1337 = vst.msk [vmem:[%s365 + $0x8] sm:$0xff] %vm666, %v1329
      %1338 = vst.msk [vmem:[%s365 + $0x10] sm:$0xff] %vm666, %v1330
      %1339 = vst.msk [vmem:[%s365 + $0x18] sm:$0xff] %vm666, %v1331
      %1340 = vst.msk [vmem:[%s365 + $0x20] sm:$0xff] %vm666, %v1332
      %1341 = vst.msk [vmem:[%s365 + $0x28] sm:$0xff] %vm666, %v1333
      %1342 = vst.msk [vmem:[%s365 + $0x30] sm:$0xff] %vm666, %v1334
      %1343 = vst.msk [vmem:[%s365 + $0x38] sm:$0xff] %vm666, %v1335
      %p1344 = scmp.lt.s32.totalorder %s21, 1
      %s1345 = scalar_select %p1344, %s21, 1
      %s1346 = smul.addr %s1345, 8
      %s1347 = smul.addr %s1346, 8
      %s1348 = scalar_lea.vmem %s8, %s1347
      %p1349 = scmp.lt.s32.totalorder %s21, 1
      %s1350 = scalar_select %p1349, %s21, 1
      %s1351 = smul.addr %s1350, 8
      %s1352 = smul.addr %s1351, 8
      %s1353 = scalar_lea.vmem %s9, %s1352
      // Predicated region
      $region53: #{residual_downsample.3} parent=51 // pred_check
        %p1354 = pneg %p217
      $region54: #{residual_downsample.3} parent=51 // pred_check_branch
        %1356 = sbr.rel (%p1354) target = $region56
      $region55: #{residual_downsample.3} parent=51 // pred_region
        _
      $region56: #{residual_downsample.3} parent=51 // pred_fallthru
        _
      // Predicated region
      $region57: #{residual_downsample.3} parent=51 // pred_check
        %p1357 = pneg %p243
      $region58: #{residual_downsample.3} parent=51 // pred_check_branch
        %1359 = sbr.rel (%p1357) target = $region60
      $region59: #{residual_downsample.3} parent=51 // pred_region
        _
      $region60: #{residual_downsample.3} parent=51 // pred_fallthru
        _
    $region52: #{residual_downsample.3} parent=5 // pred_fallthru
      _
    %p1360 = scmp.le.s32.totalorder 2, %s16
    // Predicated region
    $region61: #{residual_downsample.3} parent=5 // pred_check
      %p1361 = pneg %p1360
    $region62: #{residual_downsample.3} parent=5 // pred_check_branch
      %1363 = sbr.rel (%p1361) target = $region64
    $region63: #{residual_downsample.3} parent=5 // pred_region
      %s1364 = ssub.s32 %s16, 2
      // Predicated region
      $region65: #{residual_downsample.3} parent=63 // pred_check
        %p1365 = pneg %p223
      $region66: #{residual_downsample.3} parent=63 // pred_check_branch
        %1367 = sbr.rel (%p1365) target = $region68
      $region67: #{residual_downsample.3} parent=63 // pred_region
        %p1368 = scmp.lt.s32.totalorder %s22, 1
        %s1369 = scalar_select %p1368, %s22, 1
        %s1370 = smul.addr %s1369, 8
        %s1371 = smul.addr %s1370, 8
        %s1372 = scalar_lea.vmem %s8, %s1371
      $region68: #{residual_downsample.3} parent=63 // pred_fallthru
        _
      // Predicated region
      $region69: #{residual_downsample.3} parent=63 // pred_check
        %p1373 = pneg %p249
      $region70: #{residual_downsample.3} parent=63 // pred_check_branch
        %1375 = sbr.rel (%p1373) target = $region72
      $region71: #{residual_downsample.3} parent=63 // pred_region
        %p1376 = scmp.lt.s32.totalorder %s22, 1
        %s1377 = scalar_select %p1376, %s22, 1
        %s1378 = smul.addr %s1377, 8
        %s1379 = smul.addr %s1378, 8
        %s1380 = scalar_lea.vmem %s9, %s1379
      $region72: #{residual_downsample.3} parent=63 // pred_fallthru
        _
    $region64: #{residual_downsample.3} parent=5 // pred_fallthru
      _
  $region6: #{residual_downsample.3} parent=0 // loop_footer
    %s20 = sadd.s32 1, %s16
  $region7: #{residual_downsample.3} parent=0 // loop_footer_branch
    %15 = sbr.rel target = $region3
  $region8: #{residual_downsample.3} parent=0 // loop_exit
    _

</llo_original>
